<compile_context>
chip_gen: v7x
topology: tpu7x:2x2x1
jax: 0.10.0
libtpu: 0.0.40
codegen_flags: <defaults>
</compile_context>

<pallas_src>
import functools
import math

import jax
import jax.numpy as jnp
from jax.experimental import pallas as pl
from jax.experimental.pallas import tpu as pltpu


def _layer_norm(x, gamma, beta, eps=1e-6):
    # UER LayerNorm: gamma * (x - mean) / (std + eps) + beta,
    # where std is torch.std (unbiased, divides by N-1).
    mean = jnp.mean(x, axis=-1, keepdims=True)
    diff = x - mean
    var = jnp.sum(diff * diff, axis=-1, keepdims=True) / (x.shape[-1] - 1)
    inv = pl.reciprocal(jnp.sqrt(var) + eps, approx=True)
    return gamma * diff * inv + beta


def _gelu(x):
    # TODO(synk): UER uses exact erf-GELU; erf is not guaranteed to lower in
    # Mosaic, so the tanh approximation is used here.
    c = math.sqrt(2.0 / math.pi)
    return 0.5 * x * (1.0 + jnp.tanh(c * (x + 0.044715 * x * x * x)))


def _transformer_kernel(x_ref, mask_ref,
                        wqkv_ref, bqkv_ref,
                        wo_ref, bo_ref,
                        g1_ref, be1_ref,
                        w1_ref, b1_ref, w2_ref, b2_ref,
                        g2_ref, be2_ref,
                        out_ref, *, head_num):
    x = x_ref[0].astype(jnp.float32)        # [S, H]
    mask = mask_ref[0].astype(jnp.float32)  # [S, S] additive
    S, H = x.shape
    dph = H // head_num
    scale = 1.0 / math.sqrt(dph)

    x_b = x.astype(jnp.bfloat16)

    # --- multi-head self attention ---
    # Fused QKV projection: one [S,H] x [H,3H] bf16 matmul, f32 accumulation.
    qkv = jnp.dot(x_b, wqkv_ref[...],
                  preferred_element_type=jnp.float32) + bqkv_ref[...]
    # Fold the 1/sqrt(dph) scale into q once (instead of per-head on [S,S]).
    q = (qkv[:, 0:H] * scale).astype(jnp.bfloat16)
    k = qkv[:, H:2 * H].astype(jnp.bfloat16)
    v = qkv[:, 2 * H:3 * H].astype(jnp.bfloat16)

    # Per-head softmax(QK^T)V; concatenate heads, then one big output proj.
    ctx_heads = []
    for h in range(head_num):
        sl = slice(h * dph, (h + 1) * dph)
        qh, kh, vh = q[:, sl], k[:, sl], v[:, sl]
        scores = jax.lax.dot_general(qh, kh, (((1,), (1,)), ((), ())),
                                     preferred_element_type=jnp.float32)
        scores = scores + mask
        scores = scores - jnp.max(scores, axis=-1, keepdims=True)
        p = jnp.exp(scores)
        p = p * pl.reciprocal(jnp.sum(p, axis=-1, keepdims=True), approx=True)
        ctx_heads.append(jnp.dot(p.astype(jnp.bfloat16), vh,
                                 preferred_element_type=jnp.float32))
    ctx = jnp.concatenate(ctx_heads, axis=-1)            # [S, H], f32

    attn = jnp.dot(ctx.astype(jnp.bfloat16), wo_ref[...],
                   preferred_element_type=jnp.float32) + bo_ref[...]

    # residual + layer norm 1 (dropout_1 is identity at inference)
    inter = _layer_norm(attn + x, g1_ref[...], be1_ref[...])

    # --- position-wise feed forward ---
    h1 = jnp.dot(inter.astype(jnp.bfloat16), w1_ref[...],
                 preferred_element_type=jnp.float32) + b1_ref[...]
    h1 = _gelu(h1)
    ffn = jnp.dot(h1.astype(jnp.bfloat16), w2_ref[...],
                  preferred_element_type=jnp.float32) + b2_ref[...]

    # residual + layer norm 2 (dropout_2 is identity at inference)
    out = _layer_norm(ffn + inter, g2_ref[...], be2_ref[...])
    out_ref[0] = out.astype(out_ref.dtype)


def transformer_layer(hidden, mask, params, *, head_num):
    B, S, H = hidden.shape
    F = params["w1"].shape[1]
    mask2 = mask.reshape(B, S, S).astype(jnp.float32)

    def row(v):  # (D,) -> (1, D) so every operand is >=2D in VMEM; biases f32
        return v.reshape(1, -1).astype(jnp.float32)

    def wcast(w):  # matmul weights live in VMEM as bf16 (halves residency/DMA)
        return w.astype(jnp.bfloat16)

    # Pre-concatenate Wq|Wk|Wv -> [H, 3H] and their biases -> [3H].
    wqkv = jnp.concatenate([params["wq"], params["wk"], params["wv"]], axis=1)
    bqkv = jnp.concatenate([params["bq"], params["bk"], params["bv"]], axis=0)

    weights = [
        wcast(wqkv), row(bqkv),
        wcast(params["wo"]), row(params["bo"]),
        row(params["g1"]), row(params["be1"]),
        wcast(params["w1"]), row(params["b1"]),
        wcast(params["w2"]), row(params["b2"]),
        row(params["g2"]), row(params["be2"]),
    ]
    # Full-array blocks for all parameters (constant index across batch grid,
    # so they are DMA'd once and stay resident).
    w_specs = [pl.BlockSpec(w.shape, lambda b: (0, 0)) for w in weights]

    # Advisory cost estimate so XLA schedules around a long custom call.
    flops = B * (2 * S * H * 3 * H          # fused QKV projection
                 + 4 * S * S * H            # scores + context (all heads)
                 + 2 * S * H * H            # output projection
                 + 4 * S * H * F)           # feed-forward (two matmuls)
    transcendentals = B * (head_num * S * S + S * F)
    bytes_accessed = (hidden.size * hidden.dtype.itemsize
                      + mask2.size * 4
                      + sum(int(w.size) * w.dtype.itemsize for w in weights)
                      + B * S * H * hidden.dtype.itemsize)

    kernel = functools.partial(_transformer_kernel, head_num=head_num)
    return pl.pallas_call(
        kernel,
        out_shape=jax.ShapeDtypeStruct((B, S, H), hidden.dtype),
        grid_spec=pltpu.PrefetchScalarGridSpec(
            num_scalar_prefetch=0,
            grid=(B,),
            in_specs=[pl.BlockSpec((1, S, H), lambda b: (b, 0, 0)),
                      pl.BlockSpec((1, S, S), lambda b: (b, 0, 0))] + w_specs,
            out_specs=pl.BlockSpec((1, S, H), lambda b: (b, 0, 0)),
        ),
        compiler_params=pltpu.CompilerParams(
            dimension_semantics=("parallel",),
            vmem_limit_bytes=48 * 1024 * 1024),
        cost_estimate=pl.CostEstimate(
            flops=int(flops),
            transcendentals=int(transcendentals),
            bytes_accessed=int(bytes_accessed)),
    )(hidden, mask2, *weights)


def init_params(key, hidden_size, feedforward_size):
    ks = jax.random.split(key, 8)
    std = 0.02

    def w(k, shape):
        return (std * jax.random.normal(k, shape)).astype(jnp.float32)

    H, F = hidden_size, feedforward_size
    return {
        "wq": w(ks[0], (H, H)), "bq": jnp.zeros((H,), jnp.float32),
        "wk": w(ks[1], (H, H)), "bk": jnp.zeros((H,), jnp.float32),
        "wv": w(ks[2], (H, H)), "bv": jnp.zeros((H,), jnp.float32),
        "wo": w(ks[3], (H, H)), "bo": jnp.zeros((H,), jnp.float32),
        "g1": jnp.ones((H,), jnp.float32), "be1": jnp.zeros((H,), jnp.float32),
        "w1": w(ks[4], (H, F)), "b1": jnp.zeros((F,), jnp.float32),
        "w2": w(ks[5], (F, H)), "b2": jnp.zeros((H,), jnp.float32),
        "g2": jnp.ones((H,), jnp.float32), "be2": jnp.zeros((H,), jnp.float32),
    }


if __name__ == "__main__":
    B, S, H, HEADS, FF = 2, 8, 32, 4, 64

    key = jax.random.PRNGKey(0)
    k_x, k_p = jax.random.split(key)

    hidden = jax.random.normal(k_x, (B, S, H), dtype=jnp.float32)

    # Build an additive mask [B, 1, S, S] from key-padding lengths [8, 6].
    lengths = jnp.array([S, S - 2], dtype=jnp.int32)
    valid = (jnp.arange(S)[None, :] < lengths[:, None]).astype(jnp.float32)  # [B,S]
    mask = (1.0 - valid[:, None, None, :]) * -10000.0                        # [B,1,S,S]
    mask = jnp.broadcast_to(mask, (B, 1, S, S))

    params = init_params(k_p, H, FF)

    out = transformer_layer(hidden, mask, params, head_num=HEADS)
    out = jax.block_until_ready(out)

    assert out.shape == (B, S, H)
    assert bool(jnp.all(jnp.isfinite(out)))
    print("KERNEL_OK")
</pallas_src>

<mosaic_0001>
module attributes {stable_mosaic.version = 11 : i64} {
  func.func @_transformer_kernel(%arg0: i32, %arg1: memref<1x8x32xf32, #tpu.memory_space<vmem>>, %arg2: memref<1x8x8xf32, #tpu.memory_space<vmem>>, %arg3: memref<32x96xbf16, #tpu.memory_space<vmem>>, %arg4: memref<1x96xf32, #tpu.memory_space<vmem>>, %arg5: memref<32x32xbf16, #tpu.memory_space<vmem>>, %arg6: memref<1x32xf32, #tpu.memory_space<vmem>>, %arg7: memref<1x32xf32, #tpu.memory_space<vmem>>, %arg8: memref<1x32xf32, #tpu.memory_space<vmem>>, %arg9: memref<32x64xbf16, #tpu.memory_space<vmem>>, %arg10: memref<1x64xf32, #tpu.memory_space<vmem>>, %arg11: memref<64x32xbf16, #tpu.memory_space<vmem>>, %arg12: memref<1x32xf32, #tpu.memory_space<vmem>>, %arg13: memref<1x32xf32, #tpu.memory_space<vmem>>, %arg14: memref<1x32xf32, #tpu.memory_space<vmem>>, %arg15: memref<1x8x32xf32, #tpu.memory_space<vmem>>) attributes {dimension_semantics = [#tpu.dimension_semantics<parallel>], iteration_bounds = array<i64: 2>, scalar_prefetch = 0 : i64, scratch_operands = 0 : i64, tpu.core_type = #tpu.core_type<tc>, window_params = [{transform_indices = @transform_0, window_bounds = array<i64: 1, 8, 32>}, {transform_indices = @transform_1, window_bounds = array<i64: 1, 8, 8>}, {pipeline_mode = #tpu.pipeline_mode<synchronous>, transform_indices = @transform_2, window_bounds = array<i64: 32, 96>}, {pipeline_mode = #tpu.pipeline_mode<synchronous>, transform_indices = @transform_3, window_bounds = array<i64: 1, 96>}, {pipeline_mode = #tpu.pipeline_mode<synchronous>, transform_indices = @transform_4, window_bounds = array<i64: 32, 32>}, {pipeline_mode = #tpu.pipeline_mode<synchronous>, transform_indices = @transform_5, window_bounds = array<i64: 1, 32>}, {pipeline_mode = #tpu.pipeline_mode<synchronous>, transform_indices = @transform_6, window_bounds = array<i64: 1, 32>}, {pipeline_mode = #tpu.pipeline_mode<synchronous>, transform_indices = @transform_7, window_bounds = array<i64: 1, 32>}, {pipeline_mode = #tpu.pipeline_mode<synchronous>, transform_indices = @transform_8, window_bounds = array<i64: 32, 64>}, {pipeline_mode = #tpu.pipeline_mode<synchronous>, transform_indices = @transform_9, window_bounds = array<i64: 1, 64>}, {pipeline_mode = #tpu.pipeline_mode<synchronous>, transform_indices = @transform_10, window_bounds = array<i64: 64, 32>}, {pipeline_mode = #tpu.pipeline_mode<synchronous>, transform_indices = @transform_11, window_bounds = array<i64: 1, 32>}, {pipeline_mode = #tpu.pipeline_mode<synchronous>, transform_indices = @transform_12, window_bounds = array<i64: 1, 32>}, {pipeline_mode = #tpu.pipeline_mode<synchronous>, transform_indices = @transform_13, window_bounds = array<i64: 1, 32>}, {transform_indices = @transform_14, window_bounds = array<i64: 1, 8, 32>}]} {
    %c0 = arith.constant 0 : index
    %c0_0 = arith.constant 0 : index
    %c0_1 = arith.constant 0 : index
    %0 = vector.load %arg1[%c0, %c0_0, %c0_1] : memref<1x8x32xf32, #tpu.memory_space<vmem>>, vector<1x8x32xf32>
    %1 = vector.shape_cast %0 : vector<1x8x32xf32> to vector<8x32xf32>
    %c0_2 = arith.constant 0 : index
    %c0_3 = arith.constant 0 : index
    %c0_4 = arith.constant 0 : index
    %2 = vector.load %arg2[%c0_2, %c0_3, %c0_4] : memref<1x8x8xf32, #tpu.memory_space<vmem>>, vector<1x8x8xf32>
    %3 = vector.shape_cast %2 : vector<1x8x8xf32> to vector<8x8xf32>
    %4 = arith.truncf %1 : vector<8x32xf32> to vector<8x32xbf16>
    %c0_5 = arith.constant 0 : index
    %c0_6 = arith.constant 0 : index
    %5 = vector.load %arg3[%c0_5, %c0_6] : memref<32x96xbf16, #tpu.memory_space<vmem>>, vector<32x96xbf16>
    %cst = arith.constant dense<0.000000e+00> : vector<8x96xf32>
    %6 = tpu.matmul %4, %5, %cst {dimension_numbers = #tpu.dot_dimension_numbers<[1], [0], [0], [1], [0, 0, 1, 1], [], []>} : vector<8x32xbf16>, vector<32x96xbf16>, vector<8x96xf32> -> vector<8x96xf32>
    %c0_7 = arith.constant 0 : index
    %c0_8 = arith.constant 0 : index
    %7 = vector.load %arg4[%c0_7, %c0_8] : memref<1x96xf32, #tpu.memory_space<vmem>>, vector<1x96xf32>
    %8 = vector.broadcast %7 : vector<1x96xf32> to vector<8x96xf32>
    %9 = arith.addf %6, %8 : vector<8x96xf32>
    %10 = vector.extract_strided_slice %9 {offsets = [0, 0], sizes = [8, 32], strides = [1, 1]} : vector<8x96xf32> to vector<8x32xf32>
    %cst_9 = arith.constant 0.353553385 : f32
    %11 = vector.broadcast %cst_9 : f32 to vector<8x32xf32>
    %12 = arith.mulf %10, %11 : vector<8x32xf32>
    %13 = arith.truncf %12 : vector<8x32xf32> to vector<8x32xbf16>
    %14 = vector.extract_strided_slice %9 {offsets = [0, 32], sizes = [8, 32], strides = [1, 1]} : vector<8x96xf32> to vector<8x32xf32>
    %15 = arith.truncf %14 : vector<8x32xf32> to vector<8x32xbf16>
    %16 = vector.extract_strided_slice %9 {offsets = [0, 64], sizes = [8, 32], strides = [1, 1]} : vector<8x96xf32> to vector<8x32xf32>
    %17 = arith.truncf %16 : vector<8x32xf32> to vector<8x32xbf16>
    %18 = vector.extract_strided_slice %13 {offsets = [0, 0], sizes = [8, 8], strides = [1, 1]} : vector<8x32xbf16> to vector<8x8xbf16>
    %19 = vector.extract_strided_slice %15 {offsets = [0, 0], sizes = [8, 8], strides = [1, 1]} : vector<8x32xbf16> to vector<8x8xbf16>
    %20 = vector.extract_strided_slice %17 {offsets = [0, 0], sizes = [8, 8], strides = [1, 1]} : vector<8x32xbf16> to vector<8x8xbf16>
    %cst_10 = arith.constant dense<0.000000e+00> : vector<8x8xf32>
    %21 = tpu.matmul %18, %19, %cst_10 {dimension_numbers = #tpu.dot_dimension_numbers<[1], [1], [0], [0], [0, 0, 1, 0], [], []>} : vector<8x8xbf16>, vector<8x8xbf16>, vector<8x8xf32> -> vector<8x8xf32>
    %22 = arith.addf %21, %3 : vector<8x8xf32>
    %cst_11 = arith.constant dense<0xFF800000> : vector<8xf32>
    %23 = vector.multi_reduction <maximumf>, %22, %cst_11 [1] : vector<8x8xf32> to vector<8xf32>
    %24 = vector.shape_cast %23 : vector<8xf32> to vector<8x1xf32>
    %25 = vector.broadcast %24 : vector<8x1xf32> to vector<8x8xf32>
    %26 = arith.subf %22, %25 : vector<8x8xf32>
    %27 = math.exp %26 : vector<8x8xf32>
    %cst_12 = arith.constant dense<0.000000e+00> : vector<8xf32>
    %28 = vector.multi_reduction <add>, %27, %cst_12 [1] : vector<8x8xf32> to vector<8xf32>
    %29 = vector.shape_cast %28 : vector<8xf32> to vector<8x1xf32>
    %30 = tpu.reciprocal %29 {approx = true} : vector<8x1xf32> -> vector<8x1xf32>
    %31 = vector.broadcast %30 : vector<8x1xf32> to vector<8x8xf32>
    %32 = arith.mulf %27, %31 : vector<8x8xf32>
    %33 = arith.truncf %32 : vector<8x8xf32> to vector<8x8xbf16>
    %cst_13 = arith.constant dense<0.000000e+00> : vector<8x8xf32>
    %34 = tpu.matmul %33, %20, %cst_13 {dimension_numbers = #tpu.dot_dimension_numbers<[1], [0], [0], [1], [0, 0, 1, 1], [], []>} : vector<8x8xbf16>, vector<8x8xbf16>, vector<8x8xf32> -> vector<8x8xf32>
    %35 = vector.extract_strided_slice %13 {offsets = [0, 8], sizes = [8, 8], strides = [1, 1]} : vector<8x32xbf16> to vector<8x8xbf16>
    %36 = vector.extract_strided_slice %15 {offsets = [0, 8], sizes = [8, 8], strides = [1, 1]} : vector<8x32xbf16> to vector<8x8xbf16>
    %37 = vector.extract_strided_slice %17 {offsets = [0, 8], sizes = [8, 8], strides = [1, 1]} : vector<8x32xbf16> to vector<8x8xbf16>
    %cst_14 = arith.constant dense<0.000000e+00> : vector<8x8xf32>
    %38 = tpu.matmul %35, %36, %cst_14 {dimension_numbers = #tpu.dot_dimension_numbers<[1], [1], [0], [0], [0, 0, 1, 0], [], []>} : vector<8x8xbf16>, vector<8x8xbf16>, vector<8x8xf32> -> vector<8x8xf32>
    %39 = arith.addf %38, %3 : vector<8x8xf32>
    %cst_15 = arith.constant dense<0xFF800000> : vector<8xf32>
    %40 = vector.multi_reduction <maximumf>, %39, %cst_15 [1] : vector<8x8xf32> to vector<8xf32>
    %41 = vector.shape_cast %40 : vector<8xf32> to vector<8x1xf32>
    %42 = vector.broadcast %41 : vector<8x1xf32> to vector<8x8xf32>
    %43 = arith.subf %39, %42 : vector<8x8xf32>
    %44 = math.exp %43 : vector<8x8xf32>
    %cst_16 = arith.constant dense<0.000000e+00> : vector<8xf32>
    %45 = vector.multi_reduction <add>, %44, %cst_16 [1] : vector<8x8xf32> to vector<8xf32>
    %46 = vector.shape_cast %45 : vector<8xf32> to vector<8x1xf32>
    %47 = tpu.reciprocal %46 {approx = true} : vector<8x1xf32> -> vector<8x1xf32>
    %48 = vector.broadcast %47 : vector<8x1xf32> to vector<8x8xf32>
    %49 = arith.mulf %44, %48 : vector<8x8xf32>
    %50 = arith.truncf %49 : vector<8x8xf32> to vector<8x8xbf16>
    %cst_17 = arith.constant dense<0.000000e+00> : vector<8x8xf32>
    %51 = tpu.matmul %50, %37, %cst_17 {dimension_numbers = #tpu.dot_dimension_numbers<[1], [0], [0], [1], [0, 0, 1, 1], [], []>} : vector<8x8xbf16>, vector<8x8xbf16>, vector<8x8xf32> -> vector<8x8xf32>
    %52 = vector.extract_strided_slice %13 {offsets = [0, 16], sizes = [8, 8], strides = [1, 1]} : vector<8x32xbf16> to vector<8x8xbf16>
    %53 = vector.extract_strided_slice %15 {offsets = [0, 16], sizes = [8, 8], strides = [1, 1]} : vector<8x32xbf16> to vector<8x8xbf16>
    %54 = vector.extract_strided_slice %17 {offsets = [0, 16], sizes = [8, 8], strides = [1, 1]} : vector<8x32xbf16> to vector<8x8xbf16>
    %cst_18 = arith.constant dense<0.000000e+00> : vector<8x8xf32>
    %55 = tpu.matmul %52, %53, %cst_18 {dimension_numbers = #tpu.dot_dimension_numbers<[1], [1], [0], [0], [0, 0, 1, 0], [], []>} : vector<8x8xbf16>, vector<8x8xbf16>, vector<8x8xf32> -> vector<8x8xf32>
    %56 = arith.addf %55, %3 : vector<8x8xf32>
    %cst_19 = arith.constant dense<0xFF800000> : vector<8xf32>
    %57 = vector.multi_reduction <maximumf>, %56, %cst_19 [1] : vector<8x8xf32> to vector<8xf32>
    %58 = vector.shape_cast %57 : vector<8xf32> to vector<8x1xf32>
    %59 = vector.broadcast %58 : vector<8x1xf32> to vector<8x8xf32>
    %60 = arith.subf %56, %59 : vector<8x8xf32>
    %61 = math.exp %60 : vector<8x8xf32>
    %cst_20 = arith.constant dense<0.000000e+00> : vector<8xf32>
    %62 = vector.multi_reduction <add>, %61, %cst_20 [1] : vector<8x8xf32> to vector<8xf32>
    %63 = vector.shape_cast %62 : vector<8xf32> to vector<8x1xf32>
    %64 = tpu.reciprocal %63 {approx = true} : vector<8x1xf32> -> vector<8x1xf32>
    %65 = vector.broadcast %64 : vector<8x1xf32> to vector<8x8xf32>
    %66 = arith.mulf %61, %65 : vector<8x8xf32>
    %67 = arith.truncf %66 : vector<8x8xf32> to vector<8x8xbf16>
    %cst_21 = arith.constant dense<0.000000e+00> : vector<8x8xf32>
    %68 = tpu.matmul %67, %54, %cst_21 {dimension_numbers = #tpu.dot_dimension_numbers<[1], [0], [0], [1], [0, 0, 1, 1], [], []>} : vector<8x8xbf16>, vector<8x8xbf16>, vector<8x8xf32> -> vector<8x8xf32>
    %69 = vector.extract_strided_slice %13 {offsets = [0, 24], sizes = [8, 8], strides = [1, 1]} : vector<8x32xbf16> to vector<8x8xbf16>
    %70 = vector.extract_strided_slice %15 {offsets = [0, 24], sizes = [8, 8], strides = [1, 1]} : vector<8x32xbf16> to vector<8x8xbf16>
    %71 = vector.extract_strided_slice %17 {offsets = [0, 24], sizes = [8, 8], strides = [1, 1]} : vector<8x32xbf16> to vector<8x8xbf16>
    %cst_22 = arith.constant dense<0.000000e+00> : vector<8x8xf32>
    %72 = tpu.matmul %69, %70, %cst_22 {dimension_numbers = #tpu.dot_dimension_numbers<[1], [1], [0], [0], [0, 0, 1, 0], [], []>} : vector<8x8xbf16>, vector<8x8xbf16>, vector<8x8xf32> -> vector<8x8xf32>
    %73 = arith.addf %72, %3 : vector<8x8xf32>
    %cst_23 = arith.constant dense<0xFF800000> : vector<8xf32>
    %74 = vector.multi_reduction <maximumf>, %73, %cst_23 [1] : vector<8x8xf32> to vector<8xf32>
    %75 = vector.shape_cast %74 : vector<8xf32> to vector<8x1xf32>
    %76 = vector.broadcast %75 : vector<8x1xf32> to vector<8x8xf32>
    %77 = arith.subf %73, %76 : vector<8x8xf32>
    %78 = math.exp %77 : vector<8x8xf32>
    %cst_24 = arith.constant dense<0.000000e+00> : vector<8xf32>
    %79 = vector.multi_reduction <add>, %78, %cst_24 [1] : vector<8x8xf32> to vector<8xf32>
    %80 = vector.shape_cast %79 : vector<8xf32> to vector<8x1xf32>
    %81 = tpu.reciprocal %80 {approx = true} : vector<8x1xf32> -> vector<8x1xf32>
    %82 = vector.broadcast %81 : vector<8x1xf32> to vector<8x8xf32>
    %83 = arith.mulf %78, %82 : vector<8x8xf32>
    %84 = arith.truncf %83 : vector<8x8xf32> to vector<8x8xbf16>
    %cst_25 = arith.constant dense<0.000000e+00> : vector<8x8xf32>
    %85 = tpu.matmul %84, %71, %cst_25 {dimension_numbers = #tpu.dot_dimension_numbers<[1], [0], [0], [1], [0, 0, 1, 1], [], []>} : vector<8x8xbf16>, vector<8x8xbf16>, vector<8x8xf32> -> vector<8x8xf32>
    %86 = tpu.concatenate %34, %51, %68, %85 in 1 : vector<8x8xf32>, vector<8x8xf32>, vector<8x8xf32>, vector<8x8xf32> -> vector<8x32xf32>
    %87 = arith.truncf %86 : vector<8x32xf32> to vector<8x32xbf16>
    %c0_26 = arith.constant 0 : index
    %c0_27 = arith.constant 0 : index
    %88 = vector.load %arg5[%c0_26, %c0_27] : memref<32x32xbf16, #tpu.memory_space<vmem>>, vector<32x32xbf16>
    %cst_28 = arith.constant dense<0.000000e+00> : vector<8x32xf32>
    %89 = tpu.matmul %87, %88, %cst_28 {dimension_numbers = #tpu.dot_dimension_numbers<[1], [0], [0], [1], [0, 0, 1, 1], [], []>} : vector<8x32xbf16>, vector<32x32xbf16>, vector<8x32xf32> -> vector<8x32xf32>
    %c0_29 = arith.constant 0 : index
    %c0_30 = arith.constant 0 : index
    %90 = vector.load %arg6[%c0_29, %c0_30] : memref<1x32xf32, #tpu.memory_space<vmem>>, vector<1x32xf32>
    %91 = vector.broadcast %90 : vector<1x32xf32> to vector<8x32xf32>
    %92 = arith.addf %89, %91 : vector<8x32xf32>
    %93 = arith.addf %92, %1 : vector<8x32xf32>
    %c0_31 = arith.constant 0 : index
    %c0_32 = arith.constant 0 : index
    %94 = vector.load %arg7[%c0_31, %c0_32] : memref<1x32xf32, #tpu.memory_space<vmem>>, vector<1x32xf32>
    %c0_33 = arith.constant 0 : index
    %c0_34 = arith.constant 0 : index
    %95 = vector.load %arg8[%c0_33, %c0_34] : memref<1x32xf32, #tpu.memory_space<vmem>>, vector<1x32xf32>
    %cst_35 = arith.constant dense<0.000000e+00> : vector<8xf32>
    %96 = vector.multi_reduction <add>, %93, %cst_35 [1] : vector<8x32xf32> to vector<8xf32>
    %97 = vector.shape_cast %96 : vector<8xf32> to vector<8x1xf32>
    %cst_36 = arith.constant 3.200000e+01 : f32
    %98 = vector.broadcast %cst_36 : f32 to vector<8x1xf32>
    %99 = arith.divf %97, %98 : vector<8x1xf32>
    %100 = vector.broadcast %99 : vector<8x1xf32> to vector<8x32xf32>
    %101 = arith.subf %93, %100 : vector<8x32xf32>
    %102 = arith.mulf %101, %101 : vector<8x32xf32>
    %cst_37 = arith.constant dense<0.000000e+00> : vector<8xf32>
    %103 = vector.multi_reduction <add>, %102, %cst_37 [1] : vector<8x32xf32> to vector<8xf32>
    %104 = vector.shape_cast %103 : vector<8xf32> to vector<8x1xf32>
    %cst_38 = arith.constant 3.100000e+01 : f32
    %105 = vector.broadcast %cst_38 : f32 to vector<8x1xf32>
    %106 = arith.divf %104, %105 : vector<8x1xf32>
    %107 = math.sqrt %106 : vector<8x1xf32>
    %cst_39 = arith.constant 9.99999997E-7 : f32
    %108 = vector.broadcast %cst_39 : f32 to vector<8x1xf32>
    %109 = arith.addf %107, %108 : vector<8x1xf32>
    %110 = tpu.reciprocal %109 {approx = true} : vector<8x1xf32> -> vector<8x1xf32>
    %111 = vector.broadcast %94 : vector<1x32xf32> to vector<8x32xf32>
    %112 = arith.mulf %111, %101 : vector<8x32xf32>
    %113 = vector.broadcast %110 : vector<8x1xf32> to vector<8x32xf32>
    %114 = arith.mulf %112, %113 : vector<8x32xf32>
    %115 = vector.broadcast %95 : vector<1x32xf32> to vector<8x32xf32>
    %116 = arith.addf %114, %115 : vector<8x32xf32>
    %117 = arith.truncf %116 : vector<8x32xf32> to vector<8x32xbf16>
    %c0_40 = arith.constant 0 : index
    %c0_41 = arith.constant 0 : index
    %118 = vector.load %arg9[%c0_40, %c0_41] : memref<32x64xbf16, #tpu.memory_space<vmem>>, vector<32x64xbf16>
    %cst_42 = arith.constant dense<0.000000e+00> : vector<8x64xf32>
    %119 = tpu.matmul %117, %118, %cst_42 {dimension_numbers = #tpu.dot_dimension_numbers<[1], [0], [0], [1], [0, 0, 1, 1], [], []>} : vector<8x32xbf16>, vector<32x64xbf16>, vector<8x64xf32> -> vector<8x64xf32>
    %c0_43 = arith.constant 0 : index
    %c0_44 = arith.constant 0 : index
    %120 = vector.load %arg10[%c0_43, %c0_44] : memref<1x64xf32, #tpu.memory_space<vmem>>, vector<1x64xf32>
    %121 = vector.broadcast %120 : vector<1x64xf32> to vector<8x64xf32>
    %122 = arith.addf %119, %121 : vector<8x64xf32>
    %cst_45 = arith.constant 5.000000e-01 : f32
    %123 = vector.broadcast %cst_45 : f32 to vector<8x64xf32>
    %124 = arith.mulf %123, %122 : vector<8x64xf32>
    %cst_46 = arith.constant 4.471500e-02 : f32
    %125 = vector.broadcast %cst_46 : f32 to vector<8x64xf32>
    %126 = arith.mulf %125, %122 : vector<8x64xf32>
    %127 = arith.mulf %126, %122 : vector<8x64xf32>
    %128 = arith.mulf %127, %122 : vector<8x64xf32>
    %129 = arith.addf %122, %128 : vector<8x64xf32>
    %cst_47 = arith.constant 0.797884583 : f32
    %130 = vector.broadcast %cst_47 : f32 to vector<8x64xf32>
    %131 = arith.mulf %130, %129 : vector<8x64xf32>
    %132 = math.tanh %131 : vector<8x64xf32>
    %cst_48 = arith.constant 1.000000e+00 : f32
    %133 = vector.broadcast %cst_48 : f32 to vector<8x64xf32>
    %134 = arith.addf %133, %132 : vector<8x64xf32>
    %135 = arith.mulf %124, %134 : vector<8x64xf32>
    %136 = arith.truncf %135 : vector<8x64xf32> to vector<8x64xbf16>
    %c0_49 = arith.constant 0 : index
    %c0_50 = arith.constant 0 : index
    %137 = vector.load %arg11[%c0_49, %c0_50] : memref<64x32xbf16, #tpu.memory_space<vmem>>, vector<64x32xbf16>
    %cst_51 = arith.constant dense<0.000000e+00> : vector<8x32xf32>
    %138 = tpu.matmul %136, %137, %cst_51 {dimension_numbers = #tpu.dot_dimension_numbers<[1], [0], [0], [1], [0, 0, 1, 1], [], []>} : vector<8x64xbf16>, vector<64x32xbf16>, vector<8x32xf32> -> vector<8x32xf32>
    %c0_52 = arith.constant 0 : index
    %c0_53 = arith.constant 0 : index
    %139 = vector.load %arg12[%c0_52, %c0_53] : memref<1x32xf32, #tpu.memory_space<vmem>>, vector<1x32xf32>
    %140 = vector.broadcast %139 : vector<1x32xf32> to vector<8x32xf32>
    %141 = arith.addf %138, %140 : vector<8x32xf32>
    %142 = arith.addf %141, %116 : vector<8x32xf32>
    %c0_54 = arith.constant 0 : index
    %c0_55 = arith.constant 0 : index
    %143 = vector.load %arg13[%c0_54, %c0_55] : memref<1x32xf32, #tpu.memory_space<vmem>>, vector<1x32xf32>
    %c0_56 = arith.constant 0 : index
    %c0_57 = arith.constant 0 : index
    %144 = vector.load %arg14[%c0_56, %c0_57] : memref<1x32xf32, #tpu.memory_space<vmem>>, vector<1x32xf32>
    %cst_58 = arith.constant dense<0.000000e+00> : vector<8xf32>
    %145 = vector.multi_reduction <add>, %142, %cst_58 [1] : vector<8x32xf32> to vector<8xf32>
    %146 = vector.shape_cast %145 : vector<8xf32> to vector<8x1xf32>
    %cst_59 = arith.constant 3.200000e+01 : f32
    %147 = vector.broadcast %cst_59 : f32 to vector<8x1xf32>
    %148 = arith.divf %146, %147 : vector<8x1xf32>
    %149 = vector.broadcast %148 : vector<8x1xf32> to vector<8x32xf32>
    %150 = arith.subf %142, %149 : vector<8x32xf32>
    %151 = arith.mulf %150, %150 : vector<8x32xf32>
    %cst_60 = arith.constant dense<0.000000e+00> : vector<8xf32>
    %152 = vector.multi_reduction <add>, %151, %cst_60 [1] : vector<8x32xf32> to vector<8xf32>
    %153 = vector.shape_cast %152 : vector<8xf32> to vector<8x1xf32>
    %cst_61 = arith.constant 3.100000e+01 : f32
    %154 = vector.broadcast %cst_61 : f32 to vector<8x1xf32>
    %155 = arith.divf %153, %154 : vector<8x1xf32>
    %156 = math.sqrt %155 : vector<8x1xf32>
    %cst_62 = arith.constant 9.99999997E-7 : f32
    %157 = vector.broadcast %cst_62 : f32 to vector<8x1xf32>
    %158 = arith.addf %156, %157 : vector<8x1xf32>
    %159 = tpu.reciprocal %158 {approx = true} : vector<8x1xf32> -> vector<8x1xf32>
    %160 = vector.broadcast %143 : vector<1x32xf32> to vector<8x32xf32>
    %161 = arith.mulf %160, %150 : vector<8x32xf32>
    %162 = vector.broadcast %159 : vector<8x1xf32> to vector<8x32xf32>
    %163 = arith.mulf %161, %162 : vector<8x32xf32>
    %164 = vector.broadcast %144 : vector<1x32xf32> to vector<8x32xf32>
    %165 = arith.addf %163, %164 : vector<8x32xf32>
    %c0_63 = arith.constant 0 : index
    %c0_64 = arith.constant 0 : index
    %c0_65 = arith.constant 0 : index
    %166 = vector.load %arg15[%c0_63, %c0_64, %c0_65] : memref<1x8x32xf32, #tpu.memory_space<vmem>>, vector<1x8x32xf32>
    %167 = vector.shape_cast %166 : vector<1x8x32xf32> to vector<8x32xf32>
    %168 = vector.shape_cast %165 : vector<8x32xf32> to vector<1x8x32xf32>
    tpu.vector_store %arg15[%c0_63, %c0_64, %c0_65], %168 {strides = array<i32>} : memref<1x8x32xf32, #tpu.memory_space<vmem>>, vector<1x8x32xf32>,
    return
  }
  func.func @transform_0(%arg0: i32) -> (i32, i32, i32) {
    %c0_i32 = arith.constant 0 : i32
    %c0_i32_0 = arith.constant 0 : i32
    %c0_i32_1 = arith.constant 0 : i32
    return %arg0, %c0_i32, %c0_i32_0 : i32, i32, i32
  }
  func.func @transform_1(%arg0: i32) -> (i32, i32, i32) {
    %c0_i32 = arith.constant 0 : i32
    %c0_i32_0 = arith.constant 0 : i32
    %c0_i32_1 = arith.constant 0 : i32
    return %arg0, %c0_i32, %c0_i32_0 : i32, i32, i32
  }
  func.func @transform_2(%arg0: i32) -> (i32, i32) {
    %c0_i32 = arith.constant 0 : i32
    %c0_i32_0 = arith.constant 0 : i32
    %c0_i32_1 = arith.constant 0 : i32
    return %c0_i32, %c0_i32_0 : i32, i32
  }
  func.func @transform_3(%arg0: i32) -> (i32, i32) {
    %c0_i32 = arith.constant 0 : i32
    %c0_i32_0 = arith.constant 0 : i32
    %c0_i32_1 = arith.constant 0 : i32
    return %c0_i32, %c0_i32_0 : i32, i32
  }
  func.func @transform_4(%arg0: i32) -> (i32, i32) {
    %c0_i32 = arith.constant 0 : i32
    %c0_i32_0 = arith.constant 0 : i32
    %c0_i32_1 = arith.constant 0 : i32
    return %c0_i32, %c0_i32_0 : i32, i32
  }
  func.func @transform_5(%arg0: i32) -> (i32, i32) {
    %c0_i32 = arith.constant 0 : i32
    %c0_i32_0 = arith.constant 0 : i32
    %c0_i32_1 = arith.constant 0 : i32
    return %c0_i32, %c0_i32_0 : i32, i32
  }
  func.func @transform_6(%arg0: i32) -> (i32, i32) {
    %c0_i32 = arith.constant 0 : i32
    %c0_i32_0 = arith.constant 0 : i32
    %c0_i32_1 = arith.constant 0 : i32
    return %c0_i32, %c0_i32_0 : i32, i32
  }
  func.func @transform_7(%arg0: i32) -> (i32, i32) {
    %c0_i32 = arith.constant 0 : i32
    %c0_i32_0 = arith.constant 0 : i32
    %c0_i32_1 = arith.constant 0 : i32
    return %c0_i32, %c0_i32_0 : i32, i32
  }
  func.func @transform_8(%arg0: i32) -> (i32, i32) {
    %c0_i32 = arith.constant 0 : i32
    %c0_i32_0 = arith.constant 0 : i32
    %c0_i32_1 = arith.constant 0 : i32
    return %c0_i32, %c0_i32_0 : i32, i32
  }
  func.func @transform_9(%arg0: i32) -> (i32, i32) {
    %c0_i32 = arith.constant 0 : i32
    %c0_i32_0 = arith.constant 0 : i32
    %c0_i32_1 = arith.constant 0 : i32
    return %c0_i32, %c0_i32_0 : i32, i32
  }
  func.func @transform_10(%arg0: i32) -> (i32, i32) {
    %c0_i32 = arith.constant 0 : i32
    %c0_i32_0 = arith.constant 0 : i32
    %c0_i32_1 = arith.constant 0 : i32
    return %c0_i32, %c0_i32_0 : i32, i32
  }
  func.func @transform_11(%arg0: i32) -> (i32, i32) {
    %c0_i32 = arith.constant 0 : i32
    %c0_i32_0 = arith.constant 0 : i32
    %c0_i32_1 = arith.constant 0 : i32
    return %c0_i32, %c0_i32_0 : i32, i32
  }
  func.func @transform_12(%arg0: i32) -> (i32, i32) {
    %c0_i32 = arith.constant 0 : i32
    %c0_i32_0 = arith.constant 0 : i32
    %c0_i32_1 = arith.constant 0 : i32
    return %c0_i32, %c0_i32_0 : i32, i32
  }
  func.func @transform_13(%arg0: i32) -> (i32, i32) {
    %c0_i32 = arith.constant 0 : i32
    %c0_i32_0 = arith.constant 0 : i32
    %c0_i32_1 = arith.constant 0 : i32
    return %c0_i32, %c0_i32_0 : i32, i32
  }
  func.func @transform_14(%arg0: i32) -> (i32, i32, i32) {
    %c0_i32 = arith.constant 0 : i32
    %c0_i32_0 = arith.constant 0 : i32
    %c0_i32_1 = arith.constant 0 : i32
    return %arg0, %c0_i32, %c0_i32_0 : i32, i32, i32
  }
}

</mosaic_0001>

<llo_original>
// kernel: tpu_custom_call.1
$region0: #{tpu_custom_call.1}
  #allocation0 [shape = 'u32[]', space=smem, size = 0x4, offset = 0x4, fixed_abs, tag = 'smem constant byte address 0x4 - core index']
  #allocation1 [shape = 'u32[144,128]{1,0:T(1,128)}', space=vmem, size = 0x12000, scoped, tag = 'internal scratch']
  %s0 = inlined_call_operand.vmem [shape: f32[2,8,32], index: 0, kind: input, shape index: {}]
  %s1 = inlined_call_operand.vmem [shape: f32[2,8,8], index: 1, kind: input, shape index: {}]
  %s2 = inlined_call_operand.vmem [shape: bf16[32,96], index: 2, kind: input, shape index: {}]
  %s3 = inlined_call_operand.vmem [shape: f32[1,96], index: 3, kind: input, shape index: {}]
  %s4 = inlined_call_operand.hbm [shape: bf16[32,32], index: 4, kind: input, shape index: {}]
  %s5 = inlined_call_operand.vmem [shape: f32[1,32], index: 5, kind: input, shape index: {}]
  %s6 = inlined_call_operand.vmem [shape: f32[1,32], index: 6, kind: input, shape index: {}]
  %s7 = inlined_call_operand.vmem [shape: f32[1,32], index: 7, kind: input, shape index: {}]
  %s8 = inlined_call_operand.hbm [shape: bf16[32,64], index: 8, kind: input, shape index: {}]
  %s9 = inlined_call_operand.vmem [shape: f32[1,64], index: 9, kind: input, shape index: {}]
  %s10 = inlined_call_operand.vmem [shape: bf16[64,32], index: 10, kind: input, shape index: {}]
  %s11 = inlined_call_operand.vmem [shape: f32[1,32], index: 11, kind: input, shape index: {}]
  %s12 = inlined_call_operand.vmem [shape: f32[1,32], index: 12, kind: input, shape index: {}]
  %s13 = inlined_call_operand.vmem [shape: f32[1,32], index: 13, kind: input, shape index: {}]
  %s14 = inlined_call_operand.hbm [shape: f32[2,8,32], index: 14, kind: output, shape index: {}]
  %s15 = sld [smem:[#allocation0]]
  $region97: #{tpu_custom_call.1} parent=0
    _
  %s17 = ssub.s32 1, %s15
  %s18 = scalar_select 0, %s17, %s15
  $region1: #{tpu_custom_call.1} parent=0
    #allocation2 [shape = 'u8[8192]{0}', space=vmem, size = 0x2000, scoped, tag = 'input window, operand 4, single buffered']
    #allocation3 [shape = 's32[2]{0}', space=sflag, size = 0x8, scoped, tag = 'scoped memory for tpu_custom_call.1']
    #allocation4 [shape = 's32[2]{0}', space=sflag, size = 0x8, scoped, tag = 'scoped memory for tpu_custom_call.1']
    #allocation5 [shape = 'u8[8192]{0}', space=vmem, size = 0x2000, scoped, tag = 'input window, operand 8, single buffered']
    #allocation6 [shape = 's32[1]{0}', space=sflag, size = 0x4, scoped, tag = 'scoped memory for tpu_custom_call.1']
    #allocation7 [shape = 'u8[8192]{0}', space=vmem, size = 0x2000, scoped, tag = 'output window, operand 0']
    %19 = vsyncpa [#allocation3], 0
    %20 = vsyncpa [#allocation6], 0
    %21 = vsyncpa [#allocation4], 0
    %s22 = scalar_lea.sflag [#allocation4], 1
    %23 = vsyncpa %s22, 0
    loop: start=0, step=1, limit=4
    $region2: #{tpu_custom_call.1} parent=1 // loop_pre_header
      _
    $region3: #{tpu_custom_call.1} parent=1 // loop_header
      %s25 = sphi 0, %s29
      %p26 = scmp.ge.s32.totalorder %s25, 4
      %s35 = sphi 0, %s37
      %s38 = sphi 0, %s35
      %s39 = sphi 0, %s38
      %s55 = sphi 0, %s39
      %s61 = sphi 0, %s63
      %s64 = sphi 0, %s61
      %s65 = sphi 0, %s64
      %s81 = sphi 0, %s65
      %s85 = sphi 0, %s85
      %s87 = sphi 0, %s85
      %s88 = sphi 0, %s87
      %s102 = sphi 0, %s88
      %s106 = sphi 0, %s106
      %s108 = sphi 0, %s106
      %s109 = sphi 0, %s108
      %s123 = sphi 0, %s109
      %s127 = sphi 0, %s127
      %s129 = sphi 0, %s127
      %s130 = sphi 0, %s129
      %s144 = sphi 0, %s130
      %s148 = sphi 0, %s148
      %s150 = sphi 0, %s148
      %s151 = sphi 0, %s150
      %s165 = sphi 0, %s151
      %s169 = sphi 0, %s169
      %s171 = sphi 0, %s169
      %s172 = sphi 0, %s171
      %s186 = sphi 0, %s172
      %s190 = sphi 0, %s190
      %s192 = sphi 0, %s190
      %s193 = sphi 0, %s192
      %s207 = sphi 0, %s193
      %s211 = sphi 0, %s211
      %s213 = sphi 0, %s211
      %s214 = sphi 0, %s213
      %s228 = sphi 0, %s214
      %s232 = sphi 0, %s232
      %s234 = sphi 0, %s232
      %s235 = sphi 0, %s234
      %s249 = sphi 0, %s235
      %s253 = sphi 0, %s253
      %s255 = sphi 0, %s253
      %s256 = sphi 0, %s255
      %s270 = sphi 0, %s256
      %s274 = sphi 0, %s274
      %s276 = sphi 0, %s274
      %s277 = sphi 0, %s276
      %s291 = sphi 0, %s277
      %s295 = sphi 0, %s295
      %s297 = sphi 0, %s295
      %s298 = sphi 0, %s297
      %s312 = sphi 0, %s298
      %s316 = sphi 0, %s316
      %s318 = sphi 0, %s316
      %s319 = sphi 0, %s318
      %s333 = sphi 0, %s319
      %s339 = sphi 0, %s341
      %s342 = sphi 0, %s339
      %s343 = sphi 0, %s342
      %s359 = sphi 0, %s343
    $region4: #{tpu_custom_call.1} parent=1 // loop_header_branch
      %28 = sbr.rel (%p26) target = $region8
    $region5: #{tpu_custom_call.1} parent=1 // loop_body
      %s30 = ssub.s32 %s25, 1
      %s31 = ssub.s32 %s25, 2
      %s32 = sadd.s32 %s25, 1
      %s33 = ssub.s32 %s25, %s32
      %p34 = scmp.eq.s32.totalorder %s33, 0
      %s36 = sadd.s32 %s35, 1
      %s37 = scalar_select %p34, %s35, %s36
      %p40 = pneg %p34
      %p41 = scmp.eq.s32.totalorder %s25, 1
      %p42 = por %p40, %p41
      %p43 = scmp.ne.s32.totalorder %s35, %s38
      %p44 = scmp.eq.s32.totalorder %s25, 0
      %p45 = por %p43, %p44
      %p46 = scmp.ne.s32.totalorder %s35, %s38
      %p47 = scmp.eq.s32.totalorder %s30, 1
      %p48 = por %p46, %p47
      %p49 = scmp.ne.s32.totalorder %s38, %s39
      %p50 = scmp.eq.s32.totalorder %s30, 0
      %p51 = por %p49, %p50
      %p52 = scmp.ne.s32.totalorder %s38, %s39
      %p53 = scmp.eq.s32.totalorder %s31, 1
      %p54 = por %p52, %p53
      %p56 = scmp.ne.s32.totalorder %s39, %s55
      %p57 = scmp.eq.s32.totalorder %s31, 0
      %p58 = por %p56, %p57
      %s59 = ssub.s32 %s25, %s32
      %p60 = scmp.eq.s32.totalorder %s59, 0
      %s62 = sadd.s32 %s61, 1
      %s63 = scalar_select %p60, %s61, %s62
      %p66 = pneg %p60
      %p67 = scmp.eq.s32.totalorder %s25, 1
      %p68 = por %p66, %p67
      %p69 = scmp.ne.s32.totalorder %s61, %s64
      %p70 = scmp.eq.s32.totalorder %s25, 0
      %p71 = por %p69, %p70
      %p72 = scmp.ne.s32.totalorder %s61, %s64
      %p73 = scmp.eq.s32.totalorder %s30, 1
      %p74 = por %p72, %p73
      %p75 = scmp.ne.s32.totalorder %s64, %s65
      %p76 = scmp.eq.s32.totalorder %s30, 0
      %p77 = por %p75, %p76
      %p78 = scmp.ne.s32.totalorder %s64, %s65
      %p79 = scmp.eq.s32.totalorder %s31, 1
      %p80 = por %p78, %p79
      %p82 = scmp.ne.s32.totalorder %s65, %s81
      %p83 = scmp.eq.s32.totalorder %s31, 0
      %p84 = por %p82, %p83
      %s86 = sadd.s32 %s85, 1
      %p89 = scmp.eq.s32.totalorder %s25, 1
      %p90 = scmp.ne.s32.totalorder %s85, %s87
      %p91 = scmp.eq.s32.totalorder %s25, 0
      %p92 = por %p90, %p91
      %p93 = scmp.ne.s32.totalorder %s85, %s87
      %p94 = scmp.eq.s32.totalorder %s30, 1
      %p95 = por %p93, %p94
      %p96 = scmp.ne.s32.totalorder %s87, %s88
      %p97 = scmp.eq.s32.totalorder %s30, 0
      %p98 = por %p96, %p97
      %p99 = scmp.ne.s32.totalorder %s87, %s88
      %p100 = scmp.eq.s32.totalorder %s31, 1
      %p101 = por %p99, %p100
      %p103 = scmp.ne.s32.totalorder %s88, %s102
      %p104 = scmp.eq.s32.totalorder %s31, 0
      %p105 = por %p103, %p104
      %s107 = sadd.s32 %s106, 1
      %p110 = scmp.eq.s32.totalorder %s25, 1
      %p111 = scmp.ne.s32.totalorder %s106, %s108
      %p112 = scmp.eq.s32.totalorder %s25, 0
      %p113 = por %p111, %p112
      %p114 = scmp.ne.s32.totalorder %s106, %s108
      %p115 = scmp.eq.s32.totalorder %s30, 1
      %p116 = por %p114, %p115
      %p117 = scmp.ne.s32.totalorder %s108, %s109
      %p118 = scmp.eq.s32.totalorder %s30, 0
      %p119 = por %p117, %p118
      %p120 = scmp.ne.s32.totalorder %s108, %s109
      %p121 = scmp.eq.s32.totalorder %s31, 1
      %p122 = por %p120, %p121
      %p124 = scmp.ne.s32.totalorder %s109, %s123
      %p125 = scmp.eq.s32.totalorder %s31, 0
      %p126 = por %p124, %p125
      %s128 = sadd.s32 %s127, 1
      %p131 = scmp.eq.s32.totalorder %s25, 1
      %p132 = scmp.ne.s32.totalorder %s127, %s129
      %p133 = scmp.eq.s32.totalorder %s25, 0
      %p134 = por %p132, %p133
      %p135 = scmp.ne.s32.totalorder %s127, %s129
      %p136 = scmp.eq.s32.totalorder %s30, 1
      %p137 = por %p135, %p136
      %p138 = scmp.ne.s32.totalorder %s129, %s130
      %p139 = scmp.eq.s32.totalorder %s30, 0
      %p140 = por %p138, %p139
      %p141 = scmp.ne.s32.totalorder %s129, %s130
      %p142 = scmp.eq.s32.totalorder %s31, 1
      %p143 = por %p141, %p142
      %p145 = scmp.ne.s32.totalorder %s130, %s144
      %p146 = scmp.eq.s32.totalorder %s31, 0
      %p147 = por %p145, %p146
      %s149 = sadd.s32 %s148, 1
      %p152 = scmp.eq.s32.totalorder %s25, 1
      %p153 = scmp.ne.s32.totalorder %s148, %s150
      %p154 = scmp.eq.s32.totalorder %s25, 0
      %p155 = por %p153, %p154
      %p156 = scmp.ne.s32.totalorder %s148, %s150
      %p157 = scmp.eq.s32.totalorder %s30, 1
      %p158 = por %p156, %p157
      %p159 = scmp.ne.s32.totalorder %s150, %s151
      %p160 = scmp.eq.s32.totalorder %s30, 0
      %p161 = por %p159, %p160
      %p162 = scmp.ne.s32.totalorder %s150, %s151
      %p163 = scmp.eq.s32.totalorder %s31, 1
      %p164 = por %p162, %p163
      %p166 = scmp.ne.s32.totalorder %s151, %s165
      %p167 = scmp.eq.s32.totalorder %s31, 0
      %p168 = por %p166, %p167
      %s170 = sadd.s32 %s169, 1
      %p173 = scmp.eq.s32.totalorder %s25, 1
      %p174 = scmp.ne.s32.totalorder %s169, %s171
      %p175 = scmp.eq.s32.totalorder %s25, 0
      %p176 = por %p174, %p175
      %p177 = scmp.ne.s32.totalorder %s169, %s171
      %p178 = scmp.eq.s32.totalorder %s30, 1
      %p179 = por %p177, %p178
      %p180 = scmp.ne.s32.totalorder %s171, %s172
      %p181 = scmp.eq.s32.totalorder %s30, 0
      %p182 = por %p180, %p181
      %p183 = scmp.ne.s32.totalorder %s171, %s172
      %p184 = scmp.eq.s32.totalorder %s31, 1
      %p185 = por %p183, %p184
      %p187 = scmp.ne.s32.totalorder %s172, %s186
      %p188 = scmp.eq.s32.totalorder %s31, 0
      %p189 = por %p187, %p188
      %s191 = sadd.s32 %s190, 1
      %p194 = scmp.eq.s32.totalorder %s25, 1
      %p195 = scmp.ne.s32.totalorder %s190, %s192
      %p196 = scmp.eq.s32.totalorder %s25, 0
      %p197 = por %p195, %p196
      %p198 = scmp.ne.s32.totalorder %s190, %s192
      %p199 = scmp.eq.s32.totalorder %s30, 1
      %p200 = por %p198, %p199
      %p201 = scmp.ne.s32.totalorder %s192, %s193
      %p202 = scmp.eq.s32.totalorder %s30, 0
      %p203 = por %p201, %p202
      %p204 = scmp.ne.s32.totalorder %s192, %s193
      %p205 = scmp.eq.s32.totalorder %s31, 1
      %p206 = por %p204, %p205
      %p208 = scmp.ne.s32.totalorder %s193, %s207
      %p209 = scmp.eq.s32.totalorder %s31, 0
      %p210 = por %p208, %p209
      %s212 = sadd.s32 %s211, 1
      %p215 = scmp.eq.s32.totalorder %s25, 1
      %p216 = scmp.ne.s32.totalorder %s211, %s213
      %p217 = scmp.eq.s32.totalorder %s25, 0
      %p218 = por %p216, %p217
      %p219 = scmp.ne.s32.totalorder %s211, %s213
      %p220 = scmp.eq.s32.totalorder %s30, 1
      %p221 = por %p219, %p220
      %p222 = scmp.ne.s32.totalorder %s213, %s214
      %p223 = scmp.eq.s32.totalorder %s30, 0
      %p224 = por %p222, %p223
      %p225 = scmp.ne.s32.totalorder %s213, %s214
      %p226 = scmp.eq.s32.totalorder %s31, 1
      %p227 = por %p225, %p226
      %p229 = scmp.ne.s32.totalorder %s214, %s228
      %p230 = scmp.eq.s32.totalorder %s31, 0
      %p231 = por %p229, %p230
      %s233 = sadd.s32 %s232, 1
      %p236 = scmp.eq.s32.totalorder %s25, 1
      %p237 = scmp.ne.s32.totalorder %s232, %s234
      %p238 = scmp.eq.s32.totalorder %s25, 0
      %p239 = por %p237, %p238
      %p240 = scmp.ne.s32.totalorder %s232, %s234
      %p241 = scmp.eq.s32.totalorder %s30, 1
      %p242 = por %p240, %p241
      %p243 = scmp.ne.s32.totalorder %s234, %s235
      %p244 = scmp.eq.s32.totalorder %s30, 0
      %p245 = por %p243, %p244
      %p246 = scmp.ne.s32.totalorder %s234, %s235
      %p247 = scmp.eq.s32.totalorder %s31, 1
      %p248 = por %p246, %p247
      %p250 = scmp.ne.s32.totalorder %s235, %s249
      %p251 = scmp.eq.s32.totalorder %s31, 0
      %p252 = por %p250, %p251
      %s254 = sadd.s32 %s253, 1
      %p257 = scmp.eq.s32.totalorder %s25, 1
      %p258 = scmp.ne.s32.totalorder %s253, %s255
      %p259 = scmp.eq.s32.totalorder %s25, 0
      %p260 = por %p258, %p259
      %p261 = scmp.ne.s32.totalorder %s253, %s255
      %p262 = scmp.eq.s32.totalorder %s30, 1
      %p263 = por %p261, %p262
      %p264 = scmp.ne.s32.totalorder %s255, %s256
      %p265 = scmp.eq.s32.totalorder %s30, 0
      %p266 = por %p264, %p265
      %p267 = scmp.ne.s32.totalorder %s255, %s256
      %p268 = scmp.eq.s32.totalorder %s31, 1
      %p269 = por %p267, %p268
      %p271 = scmp.ne.s32.totalorder %s256, %s270
      %p272 = scmp.eq.s32.totalorder %s31, 0
      %p273 = por %p271, %p272
      %s275 = sadd.s32 %s274, 1
      %p278 = scmp.eq.s32.totalorder %s25, 1
      %p279 = scmp.ne.s32.totalorder %s274, %s276
      %p280 = scmp.eq.s32.totalorder %s25, 0
      %p281 = por %p279, %p280
      %p282 = scmp.ne.s32.totalorder %s274, %s276
      %p283 = scmp.eq.s32.totalorder %s30, 1
      %p284 = por %p282, %p283
      %p285 = scmp.ne.s32.totalorder %s276, %s277
      %p286 = scmp.eq.s32.totalorder %s30, 0
      %p287 = por %p285, %p286
      %p288 = scmp.ne.s32.totalorder %s276, %s277
      %p289 = scmp.eq.s32.totalorder %s31, 1
      %p290 = por %p288, %p289
      %p292 = scmp.ne.s32.totalorder %s277, %s291
      %p293 = scmp.eq.s32.totalorder %s31, 0
      %p294 = por %p292, %p293
      %s296 = sadd.s32 %s295, 1
      %p299 = scmp.eq.s32.totalorder %s25, 1
      %p300 = scmp.ne.s32.totalorder %s295, %s297
      %p301 = scmp.eq.s32.totalorder %s25, 0
      %p302 = por %p300, %p301
      %p303 = scmp.ne.s32.totalorder %s295, %s297
      %p304 = scmp.eq.s32.totalorder %s30, 1
      %p305 = por %p303, %p304
      %p306 = scmp.ne.s32.totalorder %s297, %s298
      %p307 = scmp.eq.s32.totalorder %s30, 0
      %p308 = por %p306, %p307
      %p309 = scmp.ne.s32.totalorder %s297, %s298
      %p310 = scmp.eq.s32.totalorder %s31, 1
      %p311 = por %p309, %p310
      %p313 = scmp.ne.s32.totalorder %s298, %s312
      %p314 = scmp.eq.s32.totalorder %s31, 0
      %p315 = por %p313, %p314
      %s317 = sadd.s32 %s316, 1
      %p320 = scmp.eq.s32.totalorder %s25, 1
      %p321 = scmp.ne.s32.totalorder %s316, %s318
      %p322 = scmp.eq.s32.totalorder %s25, 0
      %p323 = por %p321, %p322
      %p324 = scmp.ne.s32.totalorder %s316, %s318
      %p325 = scmp.eq.s32.totalorder %s30, 1
      %p326 = por %p324, %p325
      %p327 = scmp.ne.s32.totalorder %s318, %s319
      %p328 = scmp.eq.s32.totalorder %s30, 0
      %p329 = por %p327, %p328
      %p330 = scmp.ne.s32.totalorder %s318, %s319
      %p331 = scmp.eq.s32.totalorder %s31, 1
      %p332 = por %p330, %p331
      %p334 = scmp.ne.s32.totalorder %s319, %s333
      %p335 = scmp.eq.s32.totalorder %s31, 0
      %p336 = por %p334, %p335
      %s337 = ssub.s32 %s25, %s32
      %p338 = scmp.eq.s32.totalorder %s337, 0
      %s340 = sadd.s32 %s339, 1
      %s341 = scalar_select %p338, %s339, %s340
      %p344 = pneg %p338
      %p345 = scmp.eq.s32.totalorder %s25, 1
      %p346 = por %p344, %p345
      %p347 = scmp.ne.s32.totalorder %s339, %s342
      %p348 = scmp.eq.s32.totalorder %s25, 0
      %p349 = por %p347, %p348
      %p350 = scmp.ne.s32.totalorder %s339, %s342
      %p351 = scmp.eq.s32.totalorder %s30, 1
      %p352 = por %p350, %p351
      %p353 = scmp.ne.s32.totalorder %s342, %s343
      %p354 = scmp.eq.s32.totalorder %s30, 0
      %p355 = por %p353, %p354
      %p356 = scmp.ne.s32.totalorder %s342, %s343
      %p357 = scmp.eq.s32.totalorder %s31, 1
      %p358 = por %p356, %p357
      %p360 = scmp.ne.s32.totalorder %s343, %s359
      %p361 = scmp.eq.s32.totalorder %s31, 0
      %p362 = por %p360, %p361
      %p363 = scmp.le.s32.totalorder 1, %s25
      %p364 = scmp.lt.s32.totalorder %s25, 3
      %p365 = pnand %p363, %p364
      %p366 = pneg %p365
      // Predicated region
      $region9: #{tpu_custom_call.1} parent=5 // pred_check
        _
      $region10: #{tpu_custom_call.1} parent=5 // pred_check_branch
        %368 = sbr.rel (%p365) target = $region12
      $region11: #{tpu_custom_call.1} parent=5 // pred_region
        %s369 = ssub.s32 %s25, 1
        // Predicated region
        $region13: #{tpu_custom_call.1} parent=11 // pred_check
          %p370 = pneg %p98
        $region14: #{tpu_custom_call.1} parent=11 // pred_check_branch
          %372 = sbr.rel (%p370) target = $region16
        $region15: #{tpu_custom_call.1} parent=11 // pred_region
          _
        $region16: #{tpu_custom_call.1} parent=11 // pred_fallthru
          _
        // Predicated region
        $region17: #{tpu_custom_call.1} parent=11 // pred_check
          %p373 = pneg %p119
        $region18: #{tpu_custom_call.1} parent=11 // pred_check_branch
          %375 = sbr.rel (%p373) target = $region20
        $region19: #{tpu_custom_call.1} parent=11 // pred_region
          _
        $region20: #{tpu_custom_call.1} parent=11 // pred_fallthru
          _
        // Predicated region
        $region21: #{tpu_custom_call.1} parent=11 // pred_check
          %p376 = pneg %p140
        $region22: #{tpu_custom_call.1} parent=11 // pred_check_branch
          %378 = sbr.rel (%p376) target = $region24
        $region23: #{tpu_custom_call.1} parent=11 // pred_region
          %s380 = ssub.s32 256, 256
          %381 = vsyncadd [#allocation3], %s380
          %s382 = sshll.u32 [#allocation2], 4
          %s383 = int_to_ptr.vmem [resolvable:$true] %s382
          %388 = dma.hbm_to_vmem [thread:$0]  %s4, 256, %s383, [#allocation3], 64, 64, 4
        $region24: #{tpu_custom_call.1} parent=11 // pred_fallthru
          _
        // Predicated region
        $region25: #{tpu_custom_call.1} parent=11 // pred_check
          %p389 = pneg %p161
        $region26: #{tpu_custom_call.1} parent=11 // pred_check_branch
          %391 = sbr.rel (%p389) target = $region28
        $region27: #{tpu_custom_call.1} parent=11 // pred_region
          _
        $region28: #{tpu_custom_call.1} parent=11 // pred_fallthru
          _
        // Predicated region
        $region29: #{tpu_custom_call.1} parent=11 // pred_check
          %p392 = pneg %p182
        $region30: #{tpu_custom_call.1} parent=11 // pred_check_branch
          %394 = sbr.rel (%p392) target = $region32
        $region31: #{tpu_custom_call.1} parent=11 // pred_region
          _
        $region32: #{tpu_custom_call.1} parent=11 // pred_fallthru
          _
        // Predicated region
        $region33: #{tpu_custom_call.1} parent=11 // pred_check
          %p395 = pneg %p203
        $region34: #{tpu_custom_call.1} parent=11 // pred_check_branch
          %397 = sbr.rel (%p395) target = $region36
        $region35: #{tpu_custom_call.1} parent=11 // pred_region
          _
        $region36: #{tpu_custom_call.1} parent=11 // pred_fallthru
          _
        // Predicated region
        $region37: #{tpu_custom_call.1} parent=11 // pred_check
          %p398 = pneg %p224
        $region38: #{tpu_custom_call.1} parent=11 // pred_check_branch
          %400 = sbr.rel (%p398) target = $region40
        $region39: #{tpu_custom_call.1} parent=11 // pred_region
          %s402 = ssub.s32 256, 256
          %403 = vsyncadd [#allocation6], %s402
          %s404 = sshll.u32 [#allocation5], 4
          %s405 = int_to_ptr.vmem [resolvable:$true] %s404
          %410 = dma.hbm_to_vmem [thread:$0]  %s8, 256, %s405, [#allocation6], 64, 64, 4
        $region40: #{tpu_custom_call.1} parent=11 // pred_fallthru
          _
        // Predicated region
        $region41: #{tpu_custom_call.1} parent=11 // pred_check
          %p411 = pneg %p245
        $region42: #{tpu_custom_call.1} parent=11 // pred_check_branch
          %413 = sbr.rel (%p411) target = $region44
        $region43: #{tpu_custom_call.1} parent=11 // pred_region
          _
        $region44: #{tpu_custom_call.1} parent=11 // pred_fallthru
          _
        // Predicated region
        $region45: #{tpu_custom_call.1} parent=11 // pred_check
          %p414 = pneg %p266
        $region46: #{tpu_custom_call.1} parent=11 // pred_check_branch
          %416 = sbr.rel (%p414) target = $region48
        $region47: #{tpu_custom_call.1} parent=11 // pred_region
          _
        $region48: #{tpu_custom_call.1} parent=11 // pred_fallthru
          _
        // Predicated region
        $region49: #{tpu_custom_call.1} parent=11 // pred_check
          %p417 = pneg %p287
        $region50: #{tpu_custom_call.1} parent=11 // pred_check_branch
          %419 = sbr.rel (%p417) target = $region52
        $region51: #{tpu_custom_call.1} parent=11 // pred_region
          _
        $region52: #{tpu_custom_call.1} parent=11 // pred_fallthru
          _
        // Predicated region
        $region53: #{tpu_custom_call.1} parent=11 // pred_check
          %p420 = pneg %p308
        $region54: #{tpu_custom_call.1} parent=11 // pred_check_branch
          %422 = sbr.rel (%p420) target = $region56
        $region55: #{tpu_custom_call.1} parent=11 // pred_region
          _
        $region56: #{tpu_custom_call.1} parent=11 // pred_fallthru
          _
        // Predicated region
        $region57: #{tpu_custom_call.1} parent=11 // pred_check
          %p423 = pneg %p329
        $region58: #{tpu_custom_call.1} parent=11 // pred_check_branch
          %425 = sbr.rel (%p423) target = $region60
        $region59: #{tpu_custom_call.1} parent=11 // pred_region
          _
        $region60: #{tpu_custom_call.1} parent=11 // pred_fallthru
          _
      $region12: #{tpu_custom_call.1} parent=5 // pred_fallthru
        _
      %p426 = scmp.lt.s32.totalorder %s25, 2
      // Predicated region
      $region61: #{tpu_custom_call.1} parent=5 // pred_check
        %p427 = pneg %p426
      $region62: #{tpu_custom_call.1} parent=5 // pred_check_branch
        %429 = sbr.rel (%p427) target = $region64
      $region63: #{tpu_custom_call.1} parent=5 // pred_region
        // Predicated region
        $region65: #{tpu_custom_call.1} parent=63 // pred_check
          %p430 = pneg %p45
        $region66: #{tpu_custom_call.1} parent=63 // pred_check_branch
          %432 = sbr.rel (%p430) target = $region68
        $region67: #{tpu_custom_call.1} parent=63 // pred_region
          %p433 = scmp.lt.s32.totalorder %s25, 1
          %s434 = scalar_select %p433, %s25, 1
          %s435 = smul.addr %s434, 8
          %s436 = scalar_lea.vmem %s0, %s435
        $region68: #{tpu_custom_call.1} parent=63 // pred_fallthru
          _
        // Predicated region
        $region69: #{tpu_custom_call.1} parent=63 // pred_check
          %p437 = pneg %p71
        $region70: #{tpu_custom_call.1} parent=63 // pred_check_branch
          %439 = sbr.rel (%p437) target = $region72
        $region71: #{tpu_custom_call.1} parent=63 // pred_region
          %p440 = scmp.lt.s32.totalorder %s25, 1
          %s441 = scalar_select %p440, %s25, 1
          %s442 = smul.addr %s441, 8
          %s443 = scalar_lea.vmem %s1, %s442
        $region72: #{tpu_custom_call.1} parent=63 // pred_fallthru
          _
      $region64: #{tpu_custom_call.1} parent=5 // pred_fallthru
        _
      %p444 = scmp.le.s32.totalorder 1, %s25
      %p445 = scmp.lt.s32.totalorder %s25, 3
      %p446 = pnand %p444, %p445
      %p447 = pneg %p446
      // Predicated region
      $region73: #{tpu_custom_call.1} parent=5 // pred_check
        _
      $region74: #{tpu_custom_call.1} parent=5 // pred_check_branch
        %449 = sbr.rel (%p446) target = $region76
      $region75: #{tpu_custom_call.1} parent=5 // pred_region
        %s450 = ssub.s32 %s25, 1
        // Predicated region
        $region77: #{tpu_custom_call.1} parent=75 // pred_check
          %p451 = pneg %p140
        $region78: #{tpu_custom_call.1} parent=75 // pred_check_branch
          %453 = sbr.rel (%p451) target = $region80
        $region79: #{tpu_custom_call.1} parent=75 // pred_region
          %454 = dma.done [#allocation3], 256
        $region80: #{tpu_custom_call.1} parent=75 // pred_fallthru
          _
        // Predicated region
        $region81: #{tpu_custom_call.1} parent=75 // pred_check
          %p455 = pneg %p224
        $region82: #{tpu_custom_call.1} parent=75 // pred_check_branch
          %457 = sbr.rel (%p455) target = $region84
        $region83: #{tpu_custom_call.1} parent=75 // pred_region
          %458 = dma.done [#allocation6], 256
        $region84: #{tpu_custom_call.1} parent=75 // pred_fallthru
          _
        %p459 = scmp.lt.s32.totalorder %s30, 1
        %s460 = scalar_select %p459, %s30, 1
        %s461 = smul.addr %s460, 8
        %s462 = scalar_lea.vmem %s0, %s461
        %p463 = pneg %p51
        %p464 = pneg %p48
        %p465 = scmp.lt.s32.totalorder %s30, 1
        %s466 = scalar_select %p465, %s30, 1
        %s467 = smul.addr %s466, 8
        %s468 = scalar_lea.vmem %s1, %s467
        %p469 = pneg %p77
        %p470 = pneg %p74
        %p471 = pneg %p98
        %p472 = pneg %p95
        %p473 = pneg %p119
        %p474 = pneg %p116
        %p475 = pneg %p140
        %p476 = pneg %p137
        %p477 = pneg %p161
        %p478 = pneg %p158
        %p479 = pneg %p182
        %p480 = pneg %p179
        %p481 = pneg %p203
        %p482 = pneg %p200
        %p483 = pneg %p224
        %p484 = pneg %p221
        %p485 = pneg %p245
        %p486 = pneg %p242
        %p487 = pneg %p266
        %p488 = pneg %p263
        %p489 = pneg %p287
        %p490 = pneg %p284
        %p491 = pneg %p308
        %p492 = pneg %p305
        %p493 = pneg %p329
        %p494 = pneg %p326
        %p495 = pneg %p355
        %p496 = pneg %p352
        %s497 = sand.u32 %s342, 1
        %s498 = scalar_lea.sflag [#allocation4], %s497
        %s499 = sand.u32 %s342, 1
        %s500 = smul.addr %s499, 8
        %s501 = scalar_lea.vmem [#allocation7], %s500
        %p502 = scmp.lt.s32.totalorder %s30, 1
        %s503 = scalar_select %p502, %s30, 1
        %s504 = smul.addr %s503, 8
        %s505 = scalar_lea.vmem %s0, %s504
        %p506 = scmp.lt.s32.totalorder %s30, 1
        %s507 = scalar_select %p506, %s30, 1
        %s508 = smul.addr %s507, 8
        %s509 = scalar_lea.vmem %s1, %s508
        %v511 = vld [vmem:[%s505] sm:$0xff]
        %v512 = vld [vmem:[%s509] sm:$0xff]
        %v513 = vpack.c.bf16 %v511, %v511
        %v514 = vld [vmem:[%s2] sm:$0xf]
        %v515 = vld [vmem:[%s2 + $0x4] sm:$0xf]
        %v516 = vld [vmem:[%s2 + $0x8] sm:$0xf]
        %v517 = vld [vmem:[%s2 + $0xc] sm:$0xf]
        %v518 = vld [vmem:[%s3] sm:$0x1]
        %v520 = vlaneseq
        %v521 = vshrl.u32 %v520, 7
        %v522 = vsub.s32 0, %v521
        %v523 = vrot.slane %v518, %v522
        %v529 = vunpack.c.l.b16 %v514
        %v530 = vunpack.c.l.b16 %v515
        %v531 = vunpack.c.l.b16 %v516
        %v532 = vunpack.c.l.b16 %v517
        %v533 = vpack.c.b16 %v530, %v529
        %v534 = vpack.c.b16 %v532, %v531
        %vm537 = vcmask 261120
        %v539 = vsel %vm537, %v513, 0
        %541 = vmatprep.subr.bf16.mxu0 0
        %542 = vmatpush1.bf16.msra.mxu0 %v533
        %543 = vmatprep.subr.bf16.mxu0 0
        %544 = vmatpush1.bf16.msra.mxu0 %v534
        %545 = vmatprep.subr.bf16.mxu0 0
        %546 = vmatpush1.bf16.msra.mxu0 0
        %547 = vmatprep.subr.bf16.mxu0 0
        %548 = vmatpush1.bf16.msra.mxu0 0
        %549 = vmatprep.subr.bf16.mxu0 0
        %550 = vmatpush1.bf16.msra.mxu0 0
        %551 = vmatprep.subr.bf16.mxu0 0
        %552 = vmatpush1.bf16.msra.mxu0 0
        %553 = vmatprep.subr.bf16.mxu0 0
        %554 = vmatpush1.bf16.msra.mxu0 0
        %555 = vmatprep.subr.bf16.mxu0 0
        %556 = vmatpush1.bf16.msra.mxu0 0
        %557 = vmatprep.subr.bf16.mxu0 0
        %558 = vmatpush1.bf16.msra.mxu0 0
        %559 = vmatprep.subr.bf16.mxu0 0
        %560 = vmatpush1.bf16.msra.mxu0 0
        %561 = vmatprep.subr.bf16.mxu0 0
        %562 = vmatpush1.bf16.msra.mxu0 0
        %563 = vmatprep.subr.bf16.mxu0 0
        %564 = vmatpush1.bf16.msra.mxu0 0
        %565 = vmatprep.subr.bf16.mxu0 0
        %566 = vmatpush1.bf16.msra.mxu0 0
        %567 = vmatprep.subr.bf16.mxu0 0
        %568 = vmatpush1.bf16.msra.mxu0 0
        %569 = vmatprep.subr.bf16.mxu0 0
        %570 = vmatpush1.bf16.msra.mxu0 0
        %571 = vmatprep.subr.bf16.mxu0 0
        %572 = vmatpush1.bf16.msra.mxu0 0
        %573 = vmatprep.mubr.bf16.mxu0 0
        %574 = vmatmul.mubr.bf16.gmra.mrb[0].mxu0 %v539
        %v575 = vpop.f32.mrb[0].mxu0
        %v576 = vadd.f32 %v523, %v575
        %v577 = vpop.f32.mrb[0].mxu0
        %v578 = vpop.f32.mrb[0].mxu0
        %v579 = vpop.f32.mrb[0].mxu0
        %580 = vdwg.mxu0
        %v581 = vmul.f32 %v576, 0.35355338
        %v582 = vpack.c.bf16 %v581, %v581
        %v583 = vpack.c.bf16 %v576, %v576
        %585 = vrot.lane.b32.xlu0 %v583, 96
        %v586 = vpop.permute.xlu0 %585
        %vm587 = vcmask 64512
        %v589 = vsel %vm587, %v582, 0
        %v592 = vsel %vm587, %v586, 0
        %594 = vmatprep.subr.bf16.mxu0 0
        %595 = vmatpush1.bf16.xpose.msra.mxu0 %v592
        %596 = vmatprep.subr.bf16.mxu0 0
        %597 = vmatpush1.bf16.xpose.msra.mxu0 0
        %598 = vmatprep.subr.bf16.mxu0 0
        %599 = vmatpush1.bf16.xpose.msra.mxu0 0
        %600 = vmatprep.subr.bf16.mxu0 0
        %601 = vmatpush1.bf16.xpose.msra.mxu0 0
        %602 = vmatprep.subr.bf16.mxu0 0
        %603 = vmatpush1.bf16.xpose.msra.mxu0 0
        %604 = vmatprep.subr.bf16.mxu0 0
        %605 = vmatpush1.bf16.xpose.msra.mxu0 0
        %606 = vmatprep.subr.bf16.mxu0 0
        %607 = vmatpush1.bf16.xpose.msra.mxu0 0
        %608 = vmatprep.subr.bf16.mxu0 0
        %609 = vmatpush1.bf16.xpose.msra.mxu0 0
        %610 = vmatprep.subr.bf16.mxu0 0
        %611 = vmatpush1.bf16.xpose.msra.mxu0 0
        %612 = vmatprep.subr.bf16.mxu0 0
        %613 = vmatpush1.bf16.xpose.msra.mxu0 0
        %614 = vmatprep.subr.bf16.mxu0 0
        %615 = vmatpush1.bf16.xpose.msra.mxu0 0
        %616 = vmatprep.subr.bf16.mxu0 0
        %617 = vmatpush1.bf16.xpose.msra.mxu0 0
        %618 = vmatprep.subr.bf16.mxu0 0
        %619 = vmatpush1.bf16.xpose.msra.mxu0 0
        %620 = vmatprep.subr.bf16.mxu0 0
        %621 = vmatpush1.bf16.xpose.msra.mxu0 0
        %622 = vmatprep.subr.bf16.mxu0 0
        %623 = vmatpush1.bf16.xpose.msra.mxu0 0
        %624 = vmatprep.subr.bf16.mxu0 0
        %625 = vmatpush1.bf16.xpose.msra.mxu0 0
        %626 = vmatprep.mubr.bf16.mxu0 0
        %627 = vmatmul.mubr.bf16.gmra.mrb[0].mxu0 %v589
        %v628 = vpop.f32.mrb[0].mxu0
        %v629 = vadd.f32 %v512, %v628
        %v630 = vpop.f32.mrb[0].mxu0
        %v631 = vpop.f32.mrb[0].mxu0
        %v632 = vpop.f32.mrb[0].mxu0
        %633 = vdwg.mxu0
        %v634 = vsel %vm587, %v629, -inf
        %635 = vmax.xlane.f32.xlu0 %v634
        %v636 = vpop.xlane.xlu0 %635
        %v637 = vsub.f32 %v629, %v636
        %v638 = vmul.f32 %v637, 1.442695
        %v639 = vpow.pop %v638
        %v640 = vsel %vm587, %v639, 0.0
        %641 = vadd.xlane.f32.xlu0 %v640
        %v642 = vpop.xlane.xlu0 %641
        %v643 = vrcp.pop %v642
        %v644 = vmul.f32 %v639, %v643
        %v645 = vpack.c.bf16 %v644, %v644
        %646 = vrot.lane.b32.xlu0 %v583, 64
        %v647 = vpop.permute.xlu0 %646
        %v649 = vsel %vm587, %v645, 0
        %vm651 = vcmask 1043456
        %v653 = vsel %vm651, %v647, 0
        %655 = vmatprep.subr.bf16.mxu0 0
        %656 = vmatpush1.bf16.msra.mxu0 %v653
        %657 = vmatprep.subr.bf16.mxu0 0
        %658 = vmatpush1.bf16.msra.mxu0 0
        %659 = vmatprep.subr.bf16.mxu0 0
        %660 = vmatpush1.bf16.msra.mxu0 0
        %661 = vmatprep.subr.bf16.mxu0 0
        %662 = vmatpush1.bf16.msra.mxu0 0
        %663 = vmatprep.subr.bf16.mxu0 0
        %664 = vmatpush1.bf16.msra.mxu0 0
        %665 = vmatprep.subr.bf16.mxu0 0
        %666 = vmatpush1.bf16.msra.mxu0 0
        %667 = vmatprep.subr.bf16.mxu0 0
        %668 = vmatpush1.bf16.msra.mxu0 0
        %669 = vmatprep.subr.bf16.mxu0 0
        %670 = vmatpush1.bf16.msra.mxu0 0
        %671 = vmatprep.subr.bf16.mxu0 0
        %672 = vmatpush1.bf16.msra.mxu0 0
        %673 = vmatprep.subr.bf16.mxu0 0
        %674 = vmatpush1.bf16.msra.mxu0 0
        %675 = vmatprep.subr.bf16.mxu0 0
        %676 = vmatpush1.bf16.msra.mxu0 0
        %677 = vmatprep.subr.bf16.mxu0 0
        %678 = vmatpush1.bf16.msra.mxu0 0
        %679 = vmatprep.subr.bf16.mxu0 0
        %680 = vmatpush1.bf16.msra.mxu0 0
        %681 = vmatprep.subr.bf16.mxu0 0
        %682 = vmatpush1.bf16.msra.mxu0 0
        %683 = vmatprep.subr.bf16.mxu0 0
        %684 = vmatpush1.bf16.msra.mxu0 0
        %685 = vmatprep.subr.bf16.mxu0 0
        %686 = vmatpush1.bf16.msra.mxu0 0
        %687 = vmatprep.mubr.bf16.mxu0 0
        %688 = vmatmul.mubr.bf16.gmra.mrb[0].mxu0 %v649
        %v689 = vpop.f32.mrb[0].mxu0
        %v690 = vadd.f32 0.0, %v689
        %v691 = vpop.f32.mrb[0].mxu0
        %v692 = vpop.f32.mrb[0].mxu0
        %v693 = vpop.f32.mrb[0].mxu0
        %694 = vdwg.mxu0
        %696 = vrot.lane.b32.xlu0 %v582, 120
        %v697 = vpop.permute.xlu0 %696
        %698 = vrot.lane.b32.xlu0 %v583, 88
        %v699 = vpop.permute.xlu0 %698
        %v701 = vsel %vm587, %v697, 0
        %v704 = vsel %vm587, %v699, 0
        %706 = vmatprep.subr.bf16.mxu0 0
        %707 = vmatpush1.bf16.xpose.msra.mxu0 %v704
        %708 = vmatprep.subr.bf16.mxu0 0
        %709 = vmatpush1.bf16.xpose.msra.mxu0 0
        %710 = vmatprep.subr.bf16.mxu0 0
        %711 = vmatpush1.bf16.xpose.msra.mxu0 0
        %712 = vmatprep.subr.bf16.mxu0 0
        %713 = vmatpush1.bf16.xpose.msra.mxu0 0
        %714 = vmatprep.subr.bf16.mxu0 0
        %715 = vmatpush1.bf16.xpose.msra.mxu0 0
        %716 = vmatprep.subr.bf16.mxu0 0
        %717 = vmatpush1.bf16.xpose.msra.mxu0 0
        %718 = vmatprep.subr.bf16.mxu0 0
        %719 = vmatpush1.bf16.xpose.msra.mxu0 0
        %720 = vmatprep.subr.bf16.mxu0 0
        %721 = vmatpush1.bf16.xpose.msra.mxu0 0
        %722 = vmatprep.subr.bf16.mxu0 0
        %723 = vmatpush1.bf16.xpose.msra.mxu0 0
        %724 = vmatprep.subr.bf16.mxu0 0
        %725 = vmatpush1.bf16.xpose.msra.mxu0 0
        %726 = vmatprep.subr.bf16.mxu0 0
        %727 = vmatpush1.bf16.xpose.msra.mxu0 0
        %728 = vmatprep.subr.bf16.mxu0 0
        %729 = vmatpush1.bf16.xpose.msra.mxu0 0
        %730 = vmatprep.subr.bf16.mxu0 0
        %731 = vmatpush1.bf16.xpose.msra.mxu0 0
        %732 = vmatprep.subr.bf16.mxu0 0
        %733 = vmatpush1.bf16.xpose.msra.mxu0 0
        %734 = vmatprep.subr.bf16.mxu0 0
        %735 = vmatpush1.bf16.xpose.msra.mxu0 0
        %736 = vmatprep.subr.bf16.mxu0 0
        %737 = vmatpush1.bf16.xpose.msra.mxu0 0
        %738 = vmatprep.mubr.bf16.mxu0 0
        %739 = vmatmul.mubr.bf16.gmra.mrb[0].mxu0 %v701
        %v740 = vpop.f32.mrb[0].mxu0
        %v741 = vadd.f32 %v512, %v740
        %v742 = vpop.f32.mrb[0].mxu0
        %v743 = vpop.f32.mrb[0].mxu0
        %v744 = vpop.f32.mrb[0].mxu0
        %745 = vdwg.mxu0
        %v746 = vsel %vm587, %v741, -inf
        %747 = vmax.xlane.f32.xlu0 %v746
        %v748 = vpop.xlane.xlu0 %747
        %v749 = vsub.f32 %v741, %v748
        %v750 = vmul.f32 %v749, 1.442695
        %v751 = vpow.pop %v750
        %v752 = vsel %vm587, %v751, 0.0
        %753 = vadd.xlane.f32.xlu0 %v752
        %v754 = vpop.xlane.xlu0 %753
        %v755 = vrcp.pop %v754
        %v756 = vmul.f32 %v751, %v755
        %v757 = vpack.c.bf16 %v756, %v756
        %758 = vrot.lane.b32.xlu0 %v583, 56
        %v759 = vpop.permute.xlu0 %758
        %v761 = vsel %vm587, %v757, 0
        %v764 = vsel %vm651, %v759, 0
        %766 = vmatprep.subr.bf16.mxu0 0
        %767 = vmatpush1.bf16.msra.mxu0 %v764
        %768 = vmatprep.subr.bf16.mxu0 0
        %769 = vmatpush1.bf16.msra.mxu0 0
        %770 = vmatprep.subr.bf16.mxu0 0
        %771 = vmatpush1.bf16.msra.mxu0 0
        %772 = vmatprep.subr.bf16.mxu0 0
        %773 = vmatpush1.bf16.msra.mxu0 0
        %774 = vmatprep.subr.bf16.mxu0 0
        %775 = vmatpush1.bf16.msra.mxu0 0
        %776 = vmatprep.subr.bf16.mxu0 0
        %777 = vmatpush1.bf16.msra.mxu0 0
        %778 = vmatprep.subr.bf16.mxu0 0
        %779 = vmatpush1.bf16.msra.mxu0 0
        %780 = vmatprep.subr.bf16.mxu0 0
        %781 = vmatpush1.bf16.msra.mxu0 0
        %782 = vmatprep.subr.bf16.mxu0 0
        %783 = vmatpush1.bf16.msra.mxu0 0
        %784 = vmatprep.subr.bf16.mxu0 0
        %785 = vmatpush1.bf16.msra.mxu0 0
        %786 = vmatprep.subr.bf16.mxu0 0
        %787 = vmatpush1.bf16.msra.mxu0 0
        %788 = vmatprep.subr.bf16.mxu0 0
        %789 = vmatpush1.bf16.msra.mxu0 0
        %790 = vmatprep.subr.bf16.mxu0 0
        %791 = vmatpush1.bf16.msra.mxu0 0
        %792 = vmatprep.subr.bf16.mxu0 0
        %793 = vmatpush1.bf16.msra.mxu0 0
        %794 = vmatprep.subr.bf16.mxu0 0
        %795 = vmatpush1.bf16.msra.mxu0 0
        %796 = vmatprep.subr.bf16.mxu0 0
        %797 = vmatpush1.bf16.msra.mxu0 0
        %798 = vmatprep.mubr.bf16.mxu0 0
        %799 = vmatmul.mubr.bf16.gmra.mrb[0].mxu0 %v761
        %v800 = vpop.f32.mrb[0].mxu0
        %v801 = vadd.f32 0.0, %v800
        %v802 = vpop.f32.mrb[0].mxu0
        %v803 = vpop.f32.mrb[0].mxu0
        %v804 = vpop.f32.mrb[0].mxu0
        %805 = vdwg.mxu0
        %806 = vrot.lane.b32.xlu0 %v582, 112
        %v807 = vpop.permute.xlu0 %806
        %808 = vrot.lane.b32.xlu0 %v583, 80
        %v809 = vpop.permute.xlu0 %808
        %v811 = vsel %vm587, %v807, 0
        %v814 = vsel %vm587, %v809, 0
        %816 = vmatprep.subr.bf16.mxu0 0
        %817 = vmatpush1.bf16.xpose.msra.mxu0 %v814
        %818 = vmatprep.subr.bf16.mxu0 0
        %819 = vmatpush1.bf16.xpose.msra.mxu0 0
        %820 = vmatprep.subr.bf16.mxu0 0
        %821 = vmatpush1.bf16.xpose.msra.mxu0 0
        %822 = vmatprep.subr.bf16.mxu0 0
        %823 = vmatpush1.bf16.xpose.msra.mxu0 0
        %824 = vmatprep.subr.bf16.mxu0 0
        %825 = vmatpush1.bf16.xpose.msra.mxu0 0
        %826 = vmatprep.subr.bf16.mxu0 0
        %827 = vmatpush1.bf16.xpose.msra.mxu0 0
        %828 = vmatprep.subr.bf16.mxu0 0
        %829 = vmatpush1.bf16.xpose.msra.mxu0 0
        %830 = vmatprep.subr.bf16.mxu0 0
        %831 = vmatpush1.bf16.xpose.msra.mxu0 0
        %832 = vmatprep.subr.bf16.mxu0 0
        %833 = vmatpush1.bf16.xpose.msra.mxu0 0
        %834 = vmatprep.subr.bf16.mxu0 0
        %835 = vmatpush1.bf16.xpose.msra.mxu0 0
        %836 = vmatprep.subr.bf16.mxu0 0
        %837 = vmatpush1.bf16.xpose.msra.mxu0 0
        %838 = vmatprep.subr.bf16.mxu0 0
        %839 = vmatpush1.bf16.xpose.msra.mxu0 0
        %840 = vmatprep.subr.bf16.mxu0 0
        %841 = vmatpush1.bf16.xpose.msra.mxu0 0
        %842 = vmatprep.subr.bf16.mxu0 0
        %843 = vmatpush1.bf16.xpose.msra.mxu0 0
        %844 = vmatprep.subr.bf16.mxu0 0
        %845 = vmatpush1.bf16.xpose.msra.mxu0 0
        %846 = vmatprep.subr.bf16.mxu0 0
        %847 = vmatpush1.bf16.xpose.msra.mxu0 0
        %848 = vmatprep.mubr.bf16.mxu0 0
        %849 = vmatmul.mubr.bf16.gmra.mrb[0].mxu0 %v811
        %v850 = vpop.f32.mrb[0].mxu0
        %v851 = vadd.f32 %v512, %v850
        %v852 = vpop.f32.mrb[0].mxu0
        %v853 = vpop.f32.mrb[0].mxu0
        %v854 = vpop.f32.mrb[0].mxu0
        %855 = vdwg.mxu0
        %v856 = vsel %vm587, %v851, -inf
        %857 = vmax.xlane.f32.xlu0 %v856
        %v858 = vpop.xlane.xlu0 %857
        %v859 = vsub.f32 %v851, %v858
        %v860 = vmul.f32 %v859, 1.442695
        %v861 = vpow.pop %v860
        %v862 = vsel %vm587, %v861, 0.0
        %863 = vadd.xlane.f32.xlu0 %v862
        %v864 = vpop.xlane.xlu0 %863
        %v865 = vrcp.pop %v864
        %v866 = vmul.f32 %v861, %v865
        %v867 = vpack.c.bf16 %v866, %v866
        %868 = vrot.lane.b32.xlu0 %v583, 48
        %v869 = vpop.permute.xlu0 %868
        %v871 = vsel %vm587, %v867, 0
        %v874 = vsel %vm651, %v869, 0
        %876 = vmatprep.subr.bf16.mxu0 0
        %877 = vmatpush1.bf16.msra.mxu0 %v874
        %878 = vmatprep.subr.bf16.mxu0 0
        %879 = vmatpush1.bf16.msra.mxu0 0
        %880 = vmatprep.subr.bf16.mxu0 0
        %881 = vmatpush1.bf16.msra.mxu0 0
        %882 = vmatprep.subr.bf16.mxu0 0
        %883 = vmatpush1.bf16.msra.mxu0 0
        %884 = vmatprep.subr.bf16.mxu0 0
        %885 = vmatpush1.bf16.msra.mxu0 0
        %886 = vmatprep.subr.bf16.mxu0 0
        %887 = vmatpush1.bf16.msra.mxu0 0
        %888 = vmatprep.subr.bf16.mxu0 0
        %889 = vmatpush1.bf16.msra.mxu0 0
        %890 = vmatprep.subr.bf16.mxu0 0
        %891 = vmatpush1.bf16.msra.mxu0 0
        %892 = vmatprep.subr.bf16.mxu0 0
        %893 = vmatpush1.bf16.msra.mxu0 0
        %894 = vmatprep.subr.bf16.mxu0 0
        %895 = vmatpush1.bf16.msra.mxu0 0
        %896 = vmatprep.subr.bf16.mxu0 0
        %897 = vmatpush1.bf16.msra.mxu0 0
        %898 = vmatprep.subr.bf16.mxu0 0
        %899 = vmatpush1.bf16.msra.mxu0 0
        %900 = vmatprep.subr.bf16.mxu0 0
        %901 = vmatpush1.bf16.msra.mxu0 0
        %902 = vmatprep.subr.bf16.mxu0 0
        %903 = vmatpush1.bf16.msra.mxu0 0
        %904 = vmatprep.subr.bf16.mxu0 0
        %905 = vmatpush1.bf16.msra.mxu0 0
        %906 = vmatprep.subr.bf16.mxu0 0
        %907 = vmatpush1.bf16.msra.mxu0 0
        %908 = vmatprep.mubr.bf16.mxu0 0
        %909 = vmatmul.mubr.bf16.gmra.mrb[0].mxu0 %v871
        %v910 = vpop.f32.mrb[0].mxu0
        %v911 = vadd.f32 0.0, %v910
        %v912 = vpop.f32.mrb[0].mxu0
        %v913 = vpop.f32.mrb[0].mxu0
        %v914 = vpop.f32.mrb[0].mxu0
        %915 = vdwg.mxu0
        %916 = vrot.lane.b32.xlu0 %v582, 104
        %v917 = vpop.permute.xlu0 %916
        %918 = vrot.lane.b32.xlu0 %v583, 72
        %v919 = vpop.permute.xlu0 %918
        %v921 = vsel %vm587, %v917, 0
        %v924 = vsel %vm587, %v919, 0
        %926 = vmatprep.subr.bf16.mxu0 0
        %927 = vmatpush1.bf16.xpose.msra.mxu0 %v924
        %928 = vmatprep.subr.bf16.mxu0 0
        %929 = vmatpush1.bf16.xpose.msra.mxu0 0
        %930 = vmatprep.subr.bf16.mxu0 0
        %931 = vmatpush1.bf16.xpose.msra.mxu0 0
        %932 = vmatprep.subr.bf16.mxu0 0
        %933 = vmatpush1.bf16.xpose.msra.mxu0 0
        %934 = vmatprep.subr.bf16.mxu0 0
        %935 = vmatpush1.bf16.xpose.msra.mxu0 0
        %936 = vmatprep.subr.bf16.mxu0 0
        %937 = vmatpush1.bf16.xpose.msra.mxu0 0
        %938 = vmatprep.subr.bf16.mxu0 0
        %939 = vmatpush1.bf16.xpose.msra.mxu0 0
        %940 = vmatprep.subr.bf16.mxu0 0
        %941 = vmatpush1.bf16.xpose.msra.mxu0 0
        %942 = vmatprep.subr.bf16.mxu0 0
        %943 = vmatpush1.bf16.xpose.msra.mxu0 0
        %944 = vmatprep.subr.bf16.mxu0 0
        %945 = vmatpush1.bf16.xpose.msra.mxu0 0
        %946 = vmatprep.subr.bf16.mxu0 0
        %947 = vmatpush1.bf16.xpose.msra.mxu0 0
        %948 = vmatprep.subr.bf16.mxu0 0
        %949 = vmatpush1.bf16.xpose.msra.mxu0 0
        %950 = vmatprep.subr.bf16.mxu0 0
        %951 = vmatpush1.bf16.xpose.msra.mxu0 0
        %952 = vmatprep.subr.bf16.mxu0 0
        %953 = vmatpush1.bf16.xpose.msra.mxu0 0
        %954 = vmatprep.subr.bf16.mxu0 0
        %955 = vmatpush1.bf16.xpose.msra.mxu0 0
        %956 = vmatprep.subr.bf16.mxu0 0
        %957 = vmatpush1.bf16.xpose.msra.mxu0 0
        %958 = vmatprep.mubr.bf16.mxu0 0
        %959 = vmatmul.mubr.bf16.gmra.mrb[0].mxu0 %v921
        %v960 = vpop.f32.mrb[0].mxu0
        %v961 = vadd.f32 %v512, %v960
        %v962 = vpop.f32.mrb[0].mxu0
        %v963 = vpop.f32.mrb[0].mxu0
        %v964 = vpop.f32.mrb[0].mxu0
        %965 = vdwg.mxu0
        %v966 = vsel %vm587, %v961, -inf
        %967 = vmax.xlane.f32.xlu0 %v966
        %v968 = vpop.xlane.xlu0 %967
        %v969 = vsub.f32 %v961, %v968
        %v970 = vmul.f32 %v969, 1.442695
        %v971 = vpow.pop %v970
        %v972 = vsel %vm587, %v971, 0.0
        %973 = vadd.xlane.f32.xlu0 %v972
        %v974 = vpop.xlane.xlu0 %973
        %v975 = vrcp.pop %v974
        %v976 = vmul.f32 %v971, %v975
        %v977 = vpack.c.bf16 %v976, %v976
        %978 = vrot.lane.b32.xlu0 %v583, 40
        %v979 = vpop.permute.xlu0 %978
        %v981 = vsel %vm587, %v977, 0
        %v984 = vsel %vm651, %v979, 0
        %986 = vmatprep.subr.bf16.mxu0 0
        %987 = vmatpush1.bf16.msra.mxu0 %v984
        %988 = vmatprep.subr.bf16.mxu0 0
        %989 = vmatpush1.bf16.msra.mxu0 0
        %990 = vmatprep.subr.bf16.mxu0 0
        %991 = vmatpush1.bf16.msra.mxu0 0
        %992 = vmatprep.subr.bf16.mxu0 0
        %993 = vmatpush1.bf16.msra.mxu0 0
        %994 = vmatprep.subr.bf16.mxu0 0
        %995 = vmatpush1.bf16.msra.mxu0 0
        %996 = vmatprep.subr.bf16.mxu0 0
        %997 = vmatpush1.bf16.msra.mxu0 0
        %998 = vmatprep.subr.bf16.mxu0 0
        %999 = vmatpush1.bf16.msra.mxu0 0
        %1000 = vmatprep.subr.bf16.mxu0 0
        %1001 = vmatpush1.bf16.msra.mxu0 0
        %1002 = vmatprep.subr.bf16.mxu0 0
        %1003 = vmatpush1.bf16.msra.mxu0 0
        %1004 = vmatprep.subr.bf16.mxu0 0
        %1005 = vmatpush1.bf16.msra.mxu0 0
        %1006 = vmatprep.subr.bf16.mxu0 0
        %1007 = vmatpush1.bf16.msra.mxu0 0
        %1008 = vmatprep.subr.bf16.mxu0 0
        %1009 = vmatpush1.bf16.msra.mxu0 0
        %1010 = vmatprep.subr.bf16.mxu0 0
        %1011 = vmatpush1.bf16.msra.mxu0 0
        %1012 = vmatprep.subr.bf16.mxu0 0
        %1013 = vmatpush1.bf16.msra.mxu0 0
        %1014 = vmatprep.subr.bf16.mxu0 0
        %1015 = vmatpush1.bf16.msra.mxu0 0
        %1016 = vmatprep.subr.bf16.mxu0 0
        %1017 = vmatpush1.bf16.msra.mxu0 0
        %1018 = vmatprep.mubr.bf16.mxu0 0
        %1019 = vmatmul.mubr.bf16.gmra.mrb[0].mxu0 %v981
        %v1020 = vpop.f32.mrb[0].mxu0
        %v1021 = vadd.f32 0.0, %v1020
        %v1022 = vpop.f32.mrb[0].mxu0
        %v1023 = vpop.f32.mrb[0].mxu0
        %v1024 = vpop.f32.mrb[0].mxu0
        %1025 = vdwg.mxu0
        %1027 = vrot.lane.b32.xlu0 %v801, 8
        %v1028 = vpop.permute.xlu0 %1027
        %1031 = vrot.lane.b32.xlu0 %v911, 16
        %v1032 = vpop.permute.xlu0 %1031
        %1035 = vrot.lane.b32.xlu0 %v1021, 24
        %v1036 = vpop.permute.xlu0 %1035
        %v1038 = vsel %vm587, %v690, %v1028
        %vm1039 = vcmask 130048
        %v1040 = vsel %vm1039, %v1038, %v1032
        %vm1041 = vcmask 195584
        %v1042 = vsel %vm1041, %v1040, %v1036
        %v1043 = vpack.c.bf16 %v1042, %v1042
        %v1044 = vld [vmem:[#allocation2] sm:$0xf]
        %v1045 = vld [vmem:[#allocation2 + $0x4] sm:$0xf]
        %v1046 = vld [vmem:[#allocation2 + $0x8] sm:$0xf]
        %v1047 = vld [vmem:[#allocation2 + $0xc] sm:$0xf]
        %v1048 = vld [vmem:[%s5] sm:$0x1]
        %v1050 = vlaneseq
        %v1051 = vshrl.u32 %v1050, 7
        %v1052 = vsub.s32 0, %v1051
        %v1053 = vrot.slane %v1048, %v1052
        %v1059 = vunpack.c.l.b16 %v1044
        %v1060 = vunpack.c.l.b16 %v1045
        %v1061 = vunpack.c.l.b16 %v1046
        %v1062 = vunpack.c.l.b16 %v1047
        %v1063 = vpack.c.b16 %v1060, %v1059
        %v1064 = vpack.c.b16 %v1062, %v1061
        %v1068 = vsel %vm537, %v1043, 0
        %1070 = vmatprep.subr.bf16.mxu0 0
        %1071 = vmatpush1.bf16.msra.mxu0 %v1063
        %1072 = vmatprep.subr.bf16.mxu0 0
        %1073 = vmatpush1.bf16.msra.mxu0 %v1064
        %1074 = vmatprep.subr.bf16.mxu0 0
        %1075 = vmatpush1.bf16.msra.mxu0 0
        %1076 = vmatprep.subr.bf16.mxu0 0
        %1077 = vmatpush1.bf16.msra.mxu0 0
        %1078 = vmatprep.subr.bf16.mxu0 0
        %1079 = vmatpush1.bf16.msra.mxu0 0
        %1080 = vmatprep.subr.bf16.mxu0 0
        %1081 = vmatpush1.bf16.msra.mxu0 0
        %1082 = vmatprep.subr.bf16.mxu0 0
        %1083 = vmatpush1.bf16.msra.mxu0 0
        %1084 = vmatprep.subr.bf16.mxu0 0
        %1085 = vmatpush1.bf16.msra.mxu0 0
        %1086 = vmatprep.subr.bf16.mxu0 0
        %1087 = vmatpush1.bf16.msra.mxu0 0
        %1088 = vmatprep.subr.bf16.mxu0 0
        %1089 = vmatpush1.bf16.msra.mxu0 0
        %1090 = vmatprep.subr.bf16.mxu0 0
        %1091 = vmatpush1.bf16.msra.mxu0 0
        %1092 = vmatprep.subr.bf16.mxu0 0
        %1093 = vmatpush1.bf16.msra.mxu0 0
        %1094 = vmatprep.subr.bf16.mxu0 0
        %1095 = vmatpush1.bf16.msra.mxu0 0
        %1096 = vmatprep.subr.bf16.mxu0 0
        %1097 = vmatpush1.bf16.msra.mxu0 0
        %1098 = vmatprep.subr.bf16.mxu0 0
        %1099 = vmatpush1.bf16.msra.mxu0 0
        %1100 = vmatprep.subr.bf16.mxu0 0
        %1101 = vmatpush1.bf16.msra.mxu0 0
        %1102 = vmatprep.mubr.bf16.mxu0 0
        %1103 = vmatmul.mubr.bf16.gmra.mrb[0].mxu0 %v1068
        %v1104 = vpop.f32.mrb[0].mxu0
        %v1105 = vadd.f32 %v1053, %v1104
        %v1106 = vpop.f32.mrb[0].mxu0
        %v1107 = vpop.f32.mrb[0].mxu0
        %v1108 = vpop.f32.mrb[0].mxu0
        %1109 = vdwg.mxu0
        %v1110 = vadd.f32 %v1105, %v511
        %v1111 = vld [vmem:[%s6] sm:$0x1]
        %v1112 = vld [vmem:[%s7] sm:$0x1]
        %v1113 = vsel %vm537, %v1110, 0.0
        %1114 = vadd.xlane.f32.xlu0 %v1113
        %v1115 = vpop.xlane.xlu0 %1114
        %v1116 = vrcp.pop 32.0
        %v1117 = vmul.f32 %v1115, %v1116
        %v1118 = vsub.f32 %v1110, %v1117
        %v1119 = vmul.f32 %v1118, %v1118
        %v1120 = vsel %vm537, %v1119, 0.0
        %1121 = vadd.xlane.f32.xlu0 %v1120
        %v1122 = vpop.xlane.xlu0 %1121
        %v1123 = vrcp.pop 31.0
        %v1124 = vmul.f32 %v1122, %v1123
        %v1125 = vrsqrt.pop %v1124
        %v1126 = vmul.f32 %v1124, %v1125
        %vm1127 = vcmp.eq.f32.partialorder %v1124, inf
        %v1128 = vsel %vm1127, %v1124, %v1126
        %vm1129 = vcmp.eq.f32.partialorder %v1124, 0.0
        %v1130 = vand.u32 %v1124, 2147483648
        %v1131 = vsel %vm1129, %v1130, %v1128
        %v1132 = vadd.f32 %v1131, 1e-06
        %v1133 = vrcp.pop %v1132
        %v1135 = vlaneseq
        %v1136 = vshrl.u32 %v1135, 7
        %v1137 = vsub.s32 0, %v1136
        %v1138 = vrot.slane %v1111, %v1137
        %v1140 = vmul.f32 %v1138, %v1118
        %v1141 = vmul.f32 %v1140, %v1133
        %v1143 = vlaneseq
        %v1144 = vshrl.u32 %v1143, 7
        %v1145 = vsub.s32 0, %v1144
        %v1146 = vrot.slane %v1112, %v1145
        %v1148 = vadd.f32 %v1141, %v1146
        %v1149 = vpack.c.bf16 %v1148, %v1148
        %v1150 = vld [vmem:[#allocation5] sm:$0xf]
        %v1151 = vld [vmem:[#allocation5 + $0x4] sm:$0xf]
        %v1152 = vld [vmem:[#allocation5 + $0x8] sm:$0xf]
        %v1153 = vld [vmem:[#allocation5 + $0xc] sm:$0xf]
        %v1154 = vld [vmem:[%s9] sm:$0x1]
        %v1156 = vlaneseq
        %v1157 = vshrl.u32 %v1156, 7
        %v1158 = vsub.s32 0, %v1157
        %v1159 = vrot.slane %v1154, %v1158
        %v1165 = vunpack.c.l.b16 %v1150
        %v1166 = vunpack.c.l.b16 %v1151
        %v1167 = vunpack.c.l.b16 %v1152
        %v1168 = vunpack.c.l.b16 %v1153
        %v1169 = vpack.c.b16 %v1166, %v1165
        %v1170 = vpack.c.b16 %v1168, %v1167
        %v1174 = vsel %vm537, %v1149, 0
        %1176 = vmatprep.subr.bf16.mxu0 0
        %1177 = vmatpush1.bf16.msra.mxu0 %v1169
        %1178 = vmatprep.subr.bf16.mxu0 0
        %1179 = vmatpush1.bf16.msra.mxu0 %v1170
        %1180 = vmatprep.subr.bf16.mxu0 0
        %1181 = vmatpush1.bf16.msra.mxu0 0
        %1182 = vmatprep.subr.bf16.mxu0 0
        %1183 = vmatpush1.bf16.msra.mxu0 0
        %1184 = vmatprep.subr.bf16.mxu0 0
        %1185 = vmatpush1.bf16.msra.mxu0 0
        %1186 = vmatprep.subr.bf16.mxu0 0
        %1187 = vmatpush1.bf16.msra.mxu0 0
        %1188 = vmatprep.subr.bf16.mxu0 0
        %1189 = vmatpush1.bf16.msra.mxu0 0
        %1190 = vmatprep.subr.bf16.mxu0 0
        %1191 = vmatpush1.bf16.msra.mxu0 0
        %1192 = vmatprep.subr.bf16.mxu0 0
        %1193 = vmatpush1.bf16.msra.mxu0 0
        %1194 = vmatprep.subr.bf16.mxu0 0
        %1195 = vmatpush1.bf16.msra.mxu0 0
        %1196 = vmatprep.subr.bf16.mxu0 0
        %1197 = vmatpush1.bf16.msra.mxu0 0
        %1198 = vmatprep.subr.bf16.mxu0 0
        %1199 = vmatpush1.bf16.msra.mxu0 0
        %1200 = vmatprep.subr.bf16.mxu0 0
        %1201 = vmatpush1.bf16.msra.mxu0 0
        %1202 = vmatprep.subr.bf16.mxu0 0
        %1203 = vmatpush1.bf16.msra.mxu0 0
        %1204 = vmatprep.subr.bf16.mxu0 0
        %1205 = vmatpush1.bf16.msra.mxu0 0
        %1206 = vmatprep.subr.bf16.mxu0 0
        %1207 = vmatpush1.bf16.msra.mxu0 0
        %1208 = vmatprep.mubr.bf16.mxu0 0
        %1209 = vmatmul.mubr.bf16.gmra.mrb[0].mxu0 %v1174
        %v1210 = vpop.f32.mrb[0].mxu0
        %v1211 = vadd.f32 %v1159, %v1210
        %v1212 = vpop.f32.mrb[0].mxu0
        %v1213 = vpop.f32.mrb[0].mxu0
        %v1214 = vpop.f32.mrb[0].mxu0
        %1215 = vdwg.mxu0
        %v1216 = vmul.f32 %v1211, 0.5
        %v1217 = vmul.f32 %v1211, 0.044715
        %v1218 = vmul.f32 %v1217, %v1211
        %v1219 = vmul.f32 %v1218, %v1211
        %v1220 = vadd.f32 %v1211, %v1219
        %v1221 = vmul.f32 %v1220, 0.7978846
        %v1222 = vtanh.pop %v1221
        %v1223 = vadd.f32 %v1222, 1.0
        %v1224 = vmul.f32 %v1216, %v1223
        %v1225 = vpack.c.bf16 %v1224, %v1224
        %v1226 = vld [vmem:[%s10] sm:$0xf]
        %v1227 = vld [vmem:[%s10 + $0x4] sm:$0xf]
        %v1228 = vld [vmem:[%s10 + $0x8] sm:$0xf]
        %v1229 = vld [vmem:[%s10 + $0xc] sm:$0xf]
        %v1230 = vld [vmem:[%s10 + $0x10] sm:$0xf]
        %v1231 = vld [vmem:[%s10 + $0x14] sm:$0xf]
        %v1232 = vld [vmem:[%s10 + $0x18] sm:$0xf]
        %v1233 = vld [vmem:[%s10 + $0x1c] sm:$0xf]
        %v1234 = vld [vmem:[%s11] sm:$0x1]
        %v1236 = vlaneseq
        %v1237 = vshrl.u32 %v1236, 7
        %v1238 = vsub.s32 0, %v1237
        %v1239 = vrot.slane %v1234, %v1238
        %v1249 = vunpack.c.l.b16 %v1226
        %v1250 = vunpack.c.l.b16 %v1227
        %v1251 = vunpack.c.l.b16 %v1228
        %v1252 = vunpack.c.l.b16 %v1229
        %v1253 = vunpack.c.l.b16 %v1230
        %v1254 = vunpack.c.l.b16 %v1231
        %v1255 = vunpack.c.l.b16 %v1232
        %v1256 = vunpack.c.l.b16 %v1233
        %v1257 = vpack.c.b16 %v1250, %v1249
        %v1258 = vpack.c.b16 %v1252, %v1251
        %v1259 = vpack.c.b16 %v1254, %v1253
        %v1260 = vpack.c.b16 %v1256, %v1255
        %vm1265 = vcmask 523264
        %v1267 = vsel %vm1265, %v1225, 0
        %1269 = vmatprep.subr.bf16.mxu0 0
        %1270 = vmatpush1.bf16.msra.mxu0 %v1257
        %1271 = vmatprep.subr.bf16.mxu0 0
        %1272 = vmatpush1.bf16.msra.mxu0 %v1258
        %1273 = vmatprep.subr.bf16.mxu0 0
        %1274 = vmatpush1.bf16.msra.mxu0 %v1259
        %1275 = vmatprep.subr.bf16.mxu0 0
        %1276 = vmatpush1.bf16.msra.mxu0 %v1260
        %1277 = vmatprep.subr.bf16.mxu0 0
        %1278 = vmatpush1.bf16.msra.mxu0 0
        %1279 = vmatprep.subr.bf16.mxu0 0
        %1280 = vmatpush1.bf16.msra.mxu0 0
        %1281 = vmatprep.subr.bf16.mxu0 0
        %1282 = vmatpush1.bf16.msra.mxu0 0
        %1283 = vmatprep.subr.bf16.mxu0 0
        %1284 = vmatpush1.bf16.msra.mxu0 0
        %1285 = vmatprep.subr.bf16.mxu0 0
        %1286 = vmatpush1.bf16.msra.mxu0 0
        %1287 = vmatprep.subr.bf16.mxu0 0
        %1288 = vmatpush1.bf16.msra.mxu0 0
        %1289 = vmatprep.subr.bf16.mxu0 0
        %1290 = vmatpush1.bf16.msra.mxu0 0
        %1291 = vmatprep.subr.bf16.mxu0 0
        %1292 = vmatpush1.bf16.msra.mxu0 0
        %1293 = vmatprep.subr.bf16.mxu0 0
        %1294 = vmatpush1.bf16.msra.mxu0 0
        %1295 = vmatprep.subr.bf16.mxu0 0
        %1296 = vmatpush1.bf16.msra.mxu0 0
        %1297 = vmatprep.subr.bf16.mxu0 0
        %1298 = vmatpush1.bf16.msra.mxu0 0
        %1299 = vmatprep.subr.bf16.mxu0 0
        %1300 = vmatpush1.bf16.msra.mxu0 0
        %1301 = vmatprep.mubr.bf16.mxu0 0
        %1302 = vmatmul.mubr.bf16.gmra.mrb[0].mxu0 %v1267
        %v1303 = vpop.f32.mrb[0].mxu0
        %v1304 = vadd.f32 %v1239, %v1303
        %v1305 = vpop.f32.mrb[0].mxu0
        %v1306 = vpop.f32.mrb[0].mxu0
        %v1307 = vpop.f32.mrb[0].mxu0
        %1308 = vdwg.mxu0
        %v1309 = vadd.f32 %v1304, %v1148
        %v1310 = vld [vmem:[%s12] sm:$0x1]
        %v1311 = vld [vmem:[%s13] sm:$0x1]
        %v1312 = vsel %vm537, %v1309, 0.0
        %1313 = vadd.xlane.f32.xlu0 %v1312
        %v1314 = vpop.xlane.xlu0 %1313
        %v1315 = vmul.f32 %v1314, %v1116
        %v1316 = vsub.f32 %v1309, %v1315
        %v1317 = vmul.f32 %v1316, %v1316
        %v1318 = vsel %vm537, %v1317, 0.0
        %1319 = vadd.xlane.f32.xlu0 %v1318
        %v1320 = vpop.xlane.xlu0 %1319
        %v1321 = vmul.f32 %v1320, %v1123
        %v1322 = vrsqrt.pop %v1321
        %v1323 = vmul.f32 %v1321, %v1322
        %vm1324 = vcmp.eq.f32.partialorder %v1321, inf
        %v1325 = vsel %vm1324, %v1321, %v1323
        %vm1326 = vcmp.eq.f32.partialorder %v1321, 0.0
        %v1327 = vand.u32 %v1321, 2147483648
        %v1328 = vsel %vm1326, %v1327, %v1325
        %v1329 = vadd.f32 %v1328, 1e-06
        %v1330 = vrcp.pop %v1329
        %v1332 = vlaneseq
        %v1333 = vshrl.u32 %v1332, 7
        %v1334 = vsub.s32 0, %v1333
        %v1335 = vrot.slane %v1310, %v1334
        %v1337 = vmul.f32 %v1335, %v1316
        %v1338 = vmul.f32 %v1337, %v1330
        %v1340 = vlaneseq
        %v1341 = vshrl.u32 %v1340, 7
        %v1342 = vsub.s32 0, %v1341
        %v1343 = vrot.slane %v1311, %v1342
        %v1345 = vadd.f32 %v1338, %v1343
        %1346 = vst.msk [vmem:[%s501] sm:$0xff] %vm537, %v1345
        %s1347 = sand.u32 %s342, 1
        %s1348 = scalar_lea.sflag [#allocation4], %s1347
        %s1349 = sand.u32 %s342, 1
        %s1350 = smul.addr %s1349, 8
        %s1351 = scalar_lea.vmem [#allocation7], %s1350
        // Predicated region
        $region85: #{tpu_custom_call.1} parent=75 // pred_check
          %p1352 = pneg %p352
        $region86: #{tpu_custom_call.1} parent=75 // pred_check_branch
          %1354 = sbr.rel (%p1352) target = $region88
        $region87: #{tpu_custom_call.1} parent=75 // pred_region
          %s1356 = ssub.s32 128, 128
          %1357 = vsyncadd %s1348, %s1356
          %s1358 = smul.addr %s30, 128
          %s1359 = scalar_lea.hbm %s14, %s1358
          %s1361 = sshll.u32 %s1351, 4
          %s1362 = int_to_ptr.vmem [resolvable:$true] %s1361
          %1364 = dma.vmem_to_hbm [thread:$0]  %s1362, 128, %s1359, %s1348
        $region88: #{tpu_custom_call.1} parent=75 // pred_fallthru
          _
      $region76: #{tpu_custom_call.1} parent=5 // pred_fallthru
        _
      %p1365 = scmp.le.s32.totalorder 2, %s25
      // Predicated region
      $region89: #{tpu_custom_call.1} parent=5 // pred_check
        %p1366 = pneg %p1365
      $region90: #{tpu_custom_call.1} parent=5 // pred_check_branch
        %1368 = sbr.rel (%p1366) target = $region92
      $region91: #{tpu_custom_call.1} parent=5 // pred_region
        %s1369 = ssub.s32 %s25, 2
        // Predicated region
        $region93: #{tpu_custom_call.1} parent=91 // pred_check
          %p1370 = pneg %p358
        $region94: #{tpu_custom_call.1} parent=91 // pred_check_branch
          %1372 = sbr.rel (%p1370) target = $region96
        $region95: #{tpu_custom_call.1} parent=91 // pred_region
          %s1373 = sand.u32 %s343, 1
          %s1374 = scalar_lea.sflag [#allocation4], %s1373
          %s1375 = sand.u32 %s343, 1
          %s1376 = smul.addr %s1375, 8
          %s1377 = scalar_lea.vmem [#allocation7], %s1376
          %1378 = dma.done %s1374, 128
        $region96: #{tpu_custom_call.1} parent=91 // pred_fallthru
          _
      $region92: #{tpu_custom_call.1} parent=5 // pred_fallthru
        _
    $region6: #{tpu_custom_call.1} parent=1 // loop_footer
      %s29 = sadd.s32 1, %s25
    $region7: #{tpu_custom_call.1} parent=1 // loop_footer_branch
      %24 = sbr.rel target = $region3
    $region8: #{tpu_custom_call.1} parent=1 // loop_exit
      _
    %1379 = vsyncpa [#allocation3], 1
    %s1380 = scalar_lea.sflag [#allocation3], 1
    %1381 = vsyncpa %s1380, 1
    %1382 = vsyncpa [#allocation6], 1
    %1383 = vsyncpa [#allocation4], 1
    %s1384 = scalar_lea.sflag [#allocation4], 1
    %1385 = vsyncpa %s1384, 1

</llo_original>
